<compile_context>
chip_gen: v6e
topology: v6e:2x2x1
jax: 0.10.0
libtpu: 0.0.40
codegen_flags: <defaults>
</compile_context>

<pallas_src>
import jax
import jax.numpy as jnp
from jax import lax
from jax.experimental import pallas as pl
from jax.experimental.pallas import tpu as pltpu


def rnn_decoder_kernel(word_ref, h0_ref, c0_ref,
                       wih_ref, whh_ref, b_ref,
                       wfc_ref, bfc_ref,
                       out_ref, hT_ref, cT_ref,
                       xw_scr, hall_scr):
    TB, _ = word_ref.shape
    B, H = h0_ref.shape
    T = TB // B

    # (1) Hoisted input projection: one matmul + one bias broadcast, done
    #     before the recurrence starts.  (T*B, I) @ (I, 4H) -> (T*B, 4H).
    xw_scr[...] = (jnp.dot(word_ref[...], wih_ref[...],
                           preferred_element_type=jnp.float32)
                   + b_ref[...])

    h = h0_ref[...]                                   # (B, H), register-carried
    c = c0_ref[...]                                   # (B, H), register-carried

    # (2) Recurrence, fully unrolled (T static & tiny).  Only h @ W_hh, the
    #     gate nonlinearities, and the c/h elementwise updates remain on the
    #     serial critical path.
    for t in range(T):
        xg = xw_scr[pl.ds(t * B, B), :]               # (B, 4H), static offset
        gates = xg + jnp.dot(h, whh_ref[...],
                             preferred_element_type=jnp.float32)

        # Whole-vreg nonlinearities (2 EUP ops instead of 4), then static
        # lane-group extraction.  PyTorch LSTM gate order: [i, f, g, o].
        sig = jax.nn.sigmoid(gates)
        tg = jnp.tanh(gates)
        i_g = sig[:, 0:H]
        f_g = sig[:, H:2 * H]
        g_g = tg[:, 2 * H:3 * H]
        o_g = sig[:, 3 * H:4 * H]

        c = f_g * c + i_g * g_g
        h = o_g * jnp.tanh(c)

        hall_scr[pl.ds(t * B, B), :] = h              # stash for the FC head

    # (3) Hoisted FC head: one (T*B, H) @ (H, O) matmul + one bulk store.
    out_ref[...] = (jnp.dot(hall_scr[...], wfc_ref[...],
                            preferred_element_type=jnp.float32)
                    + bfc_ref[...])
    hT_ref[...] = h
    cT_ref[...] = c


def prepare_params(params):
    """One-time parameter prep: transposes + bias fusion in MXU-friendly layout."""
    four_h = params["w_ih"].shape[0]
    num_output = params["w_fc"].shape[0]
    return {
        "wih_t": jnp.transpose(params["w_ih"]),                     # (I, 4H)
        "whh_t": jnp.transpose(params["w_hh"]),                     # (H, 4H)
        "b": (params["b_ih"] + params["b_hh"]).reshape(1, four_h),  # (1, 4H)
        "wfc_t": jnp.transpose(params["w_fc"]),                     # (H, O)
        "bfc": params["b_fc"].reshape(1, num_output),               # (1, O)
    }


def rnn_decoder_forward(word, h, c, prep):
    """word: (B, T, I) f32, h/c: (1, B, H) f32.  Returns (cell_out, [], (h, c))."""
    B, T, I = word.shape
    H = h.shape[-1]
    O = prep["wfc_t"].shape[1]

    # Time-major, flattened to 2D so the kernel only handles plain 2D tiles.
    word2d = jnp.transpose(word, (1, 0, 2)).reshape(T * B, I)

    vmem = pl.BlockSpec(memory_space=pltpu.MemorySpace.VMEM)

    out2d, hT, cT = pl.pallas_call(
        rnn_decoder_kernel,
        out_shape=(jax.ShapeDtypeStruct((T * B, O), jnp.float32),
                   jax.ShapeDtypeStruct((B, H), jnp.float32),
                   jax.ShapeDtypeStruct((B, H), jnp.float32)),
        in_specs=[vmem] * 8,
        out_specs=(vmem, vmem, vmem),
        scratch_shapes=[pltpu.VMEM((T * B, 4 * H), jnp.float32),   # xW + b
                        pltpu.VMEM((T * B, H), jnp.float32)],      # all h_t
    )(word2d, h[0], c[0], prep["wih_t"], prep["whh_t"], prep["b"],
      prep["wfc_t"], prep["bfc"])

    # lstm_output.squeeze(0) is a no-op for batch_first with B > 1; the FC was
    # already applied inside the kernel, so cell_out is (B, T, O).
    cell_out = jnp.transpose(out2d.reshape(T, B, O), (1, 0, 2))
    return cell_out, [], (hT[None, ...], cT[None, ...])


rnn_decoder_forward_jit = jax.jit(rnn_decoder_forward)


def reference_forward(word, h, c, params):
    """Pure-JAX reference replicating torch.nn.LSTM + nn.Linear semantics."""
    H = h.shape[-1]
    wih_t = jnp.transpose(params["w_ih"])
    whh_t = jnp.transpose(params["w_hh"])
    b = params["b_ih"] + params["b_hh"]

    def step(carry, x_t):
        h_prev, c_prev = carry
        gates = x_t @ wih_t + h_prev @ whh_t + b
        i_g = jax.nn.sigmoid(gates[:, 0:H])
        f_g = jax.nn.sigmoid(gates[:, H:2 * H])
        g_g = jnp.tanh(gates[:, 2 * H:3 * H])
        o_g = jax.nn.sigmoid(gates[:, 3 * H:4 * H])
        c_new = f_g * c_prev + i_g * g_g
        h_new = o_g * jnp.tanh(c_new)
        return (h_new, c_new), h_new

    (hT, cT), hs = lax.scan(step, (h[0], c[0]), jnp.transpose(word, (1, 0, 2)))
    out = hs @ jnp.transpose(params["w_fc"]) + params["b_fc"]   # (T, B, O)
    return jnp.transpose(out, (1, 0, 2)), hT[None, ...], cT[None, ...]


def init_params(key, input_size, hidden_size, num_output):
    ks = jax.random.split(key, 6)
    bound = 1.0 / jnp.sqrt(hidden_size)
    u = lambda k, shape: jax.random.uniform(k, shape, jnp.float32, -bound, bound)
    return {
        "w_ih": u(ks[0], (4 * hidden_size, input_size)),
        "w_hh": u(ks[1], (4 * hidden_size, hidden_size)),
        "b_ih": u(ks[2], (4 * hidden_size,)),
        "b_hh": u(ks[3], (4 * hidden_size,)),
        "w_fc": u(ks[4], (num_output, hidden_size)),
        "b_fc": u(ks[5], (num_output,)),
    }


if __name__ == "__main__":
    B, T = 2, 8
    INPUT_SIZE, HIDDEN_SIZE, NUM_OUTPUT = 16, 32, 16

    key = jax.random.PRNGKey(0)
    k_word, k_h, k_c, k_params, k_lens = jax.random.split(key, 5)

    word = jax.random.normal(k_word, (B, T, INPUT_SIZE), jnp.float32)
    h0 = jax.random.normal(k_h, (1, B, HIDDEN_SIZE), jnp.float32)
    c0 = jax.random.normal(k_c, (1, B, HIDDEN_SIZE), jnp.float32)
    params = init_params(k_params, INPUT_SIZE, HIDDEN_SIZE, NUM_OUTPUT)
    prep = prepare_params(params)
    # input_lens / encoder are unused by the reference forward pass.
    input_lens = jnp.full((B,), T, jnp.int32)

    cell_out, attn, (hT, cT) = rnn_decoder_forward_jit(word, h0, c0, prep)
    jax.block_until_ready((cell_out, hT, cT))

    ref_out, ref_h, ref_c = reference_forward(word, h0, c0, params)
    assert cell_out.shape == (B, T, NUM_OUTPUT)
    assert hT.shape == (1, B, HIDDEN_SIZE) and cT.shape == (1, B, HIDDEN_SIZE)
    assert jnp.allclose(cell_out, ref_out, atol=1e-4, rtol=1e-4)
    assert jnp.allclose(hT, ref_h, atol=1e-4, rtol=1e-4)
    assert jnp.allclose(cT, ref_c, atol=1e-4, rtol=1e-4)

    print("KERNEL_OK")
</pallas_src>

<mosaic_0001>
module attributes {stable_mosaic.version = 11 : i64} {
  func.func @rnn_decoder_kernel(%arg0: memref<16x16xf32, #tpu.memory_space<vmem>>, %arg1: memref<2x32xf32, #tpu.memory_space<vmem>>, %arg2: memref<2x32xf32, #tpu.memory_space<vmem>>, %arg3: memref<16x128xf32, #tpu.memory_space<vmem>>, %arg4: memref<32x128xf32, #tpu.memory_space<vmem>>, %arg5: memref<1x128xf32, #tpu.memory_space<vmem>>, %arg6: memref<32x16xf32, #tpu.memory_space<vmem>>, %arg7: memref<1x16xf32, #tpu.memory_space<vmem>>, %arg8: memref<16x16xf32, #tpu.memory_space<vmem>>, %arg9: memref<2x32xf32, #tpu.memory_space<vmem>>, %arg10: memref<2x32xf32, #tpu.memory_space<vmem>>, %arg11: memref<16x128xf32, #tpu.memory_space<vmem>>, %arg12: memref<16x32xf32, #tpu.memory_space<vmem>>) attributes {dimension_semantics = [], scalar_prefetch = 0 : i64, scratch_operands = 2 : i64, tpu.core_type = #tpu.core_type<tc>} {
    %c0 = arith.constant 0 : index
    %c0_0 = arith.constant 0 : index
    %0 = vector.load %arg0[%c0, %c0_0] : memref<16x16xf32, #tpu.memory_space<vmem>>, vector<16x16xf32>
    %c0_1 = arith.constant 0 : index
    %c0_2 = arith.constant 0 : index
    %1 = vector.load %arg3[%c0_1, %c0_2] : memref<16x128xf32, #tpu.memory_space<vmem>>, vector<16x128xf32>
    %cst = arith.constant dense<0.000000e+00> : vector<16x128xf32>
    %2 = tpu.matmul %0, %1, %cst {dimension_numbers = #tpu.dot_dimension_numbers<[1], [0], [0], [1], [0, 0, 1, 1], [], []>} : vector<16x16xf32>, vector<16x128xf32>, vector<16x128xf32> -> vector<16x128xf32>
    %c0_3 = arith.constant 0 : index
    %c0_4 = arith.constant 0 : index
    %3 = vector.load %arg5[%c0_3, %c0_4] : memref<1x128xf32, #tpu.memory_space<vmem>>, vector<1x128xf32>
    %4 = vector.broadcast %3 : vector<1x128xf32> to vector<16x128xf32>
    %5 = arith.addf %2, %4 : vector<16x128xf32>
    %c0_5 = arith.constant 0 : index
    %c0_6 = arith.constant 0 : index
    %6 = vector.load %arg11[%c0_5, %c0_6] : memref<16x128xf32, #tpu.memory_space<vmem>>, vector<16x128xf32>
    tpu.vector_store %arg11[%c0_5, %c0_6], %5 {strides = array<i32>} : memref<16x128xf32, #tpu.memory_space<vmem>>, vector<16x128xf32>,
    %c0_7 = arith.constant 0 : index
    %c0_8 = arith.constant 0 : index
    %7 = vector.load %arg1[%c0_7, %c0_8] : memref<2x32xf32, #tpu.memory_space<vmem>>, vector<2x32xf32>
    %c0_9 = arith.constant 0 : index
    %c0_10 = arith.constant 0 : index
    %8 = vector.load %arg2[%c0_9, %c0_10] : memref<2x32xf32, #tpu.memory_space<vmem>>, vector<2x32xf32>
    %c0_11 = arith.constant 0 : index
    %c0_12 = arith.constant 0 : index
    %9 = vector.load %arg11[%c0_11, %c0_12] : memref<16x128xf32, #tpu.memory_space<vmem>>, vector<2x128xf32>
    %c0_13 = arith.constant 0 : index
    %c0_14 = arith.constant 0 : index
    %10 = vector.load %arg4[%c0_13, %c0_14] : memref<32x128xf32, #tpu.memory_space<vmem>>, vector<32x128xf32>
    %cst_15 = arith.constant dense<0.000000e+00> : vector<2x128xf32>
    %11 = tpu.matmul %7, %10, %cst_15 {dimension_numbers = #tpu.dot_dimension_numbers<[1], [0], [0], [1], [0, 0, 1, 1], [], []>} : vector<2x32xf32>, vector<32x128xf32>, vector<2x128xf32> -> vector<2x128xf32>
    %12 = arith.addf %9, %11 : vector<2x128xf32>
    %13 = arith.negf %12 : vector<2x128xf32>
    %14 = math.exp %13 : vector<2x128xf32>
    %cst_16 = arith.constant 1.000000e+00 : f32
    %15 = vector.broadcast %cst_16 : f32 to vector<2x128xf32>
    %16 = arith.addf %15, %14 : vector<2x128xf32>
    %17 = arith.divf %15, %16 : vector<2x128xf32>
    %18 = math.tanh %12 : vector<2x128xf32>
    %19 = vector.extract_strided_slice %17 {offsets = [0, 0], sizes = [2, 32], strides = [1, 1]} : vector<2x128xf32> to vector<2x32xf32>
    %20 = vector.extract_strided_slice %17 {offsets = [0, 32], sizes = [2, 32], strides = [1, 1]} : vector<2x128xf32> to vector<2x32xf32>
    %21 = vector.extract_strided_slice %18 {offsets = [0, 64], sizes = [2, 32], strides = [1, 1]} : vector<2x128xf32> to vector<2x32xf32>
    %22 = vector.extract_strided_slice %17 {offsets = [0, 96], sizes = [2, 32], strides = [1, 1]} : vector<2x128xf32> to vector<2x32xf32>
    %23 = arith.mulf %20, %8 : vector<2x32xf32>
    %24 = arith.mulf %19, %21 : vector<2x32xf32>
    %25 = arith.addf %23, %24 : vector<2x32xf32>
    %26 = math.tanh %25 : vector<2x32xf32>
    %27 = arith.mulf %22, %26 : vector<2x32xf32>
    %c0_17 = arith.constant 0 : index
    %c0_18 = arith.constant 0 : index
    %28 = vector.load %arg12[%c0_17, %c0_18] : memref<16x32xf32, #tpu.memory_space<vmem>>, vector<2x32xf32>
    tpu.vector_store %arg12[%c0_17, %c0_18], %27 {strides = array<i32>} : memref<16x32xf32, #tpu.memory_space<vmem>>, vector<2x32xf32>,
    %c2 = arith.constant 2 : index
    %c0_19 = arith.constant 0 : index
    %29 = vector.load %arg11[%c2, %c0_19] : memref<16x128xf32, #tpu.memory_space<vmem>>, vector<2x128xf32>
    %c0_20 = arith.constant 0 : index
    %c0_21 = arith.constant 0 : index
    %30 = vector.load %arg4[%c0_20, %c0_21] : memref<32x128xf32, #tpu.memory_space<vmem>>, vector<32x128xf32>
    %cst_22 = arith.constant dense<0.000000e+00> : vector<2x128xf32>
    %31 = tpu.matmul %27, %30, %cst_22 {dimension_numbers = #tpu.dot_dimension_numbers<[1], [0], [0], [1], [0, 0, 1, 1], [], []>} : vector<2x32xf32>, vector<32x128xf32>, vector<2x128xf32> -> vector<2x128xf32>
    %32 = arith.addf %29, %31 : vector<2x128xf32>
    %33 = arith.negf %32 : vector<2x128xf32>
    %34 = math.exp %33 : vector<2x128xf32>
    %cst_23 = arith.constant 1.000000e+00 : f32
    %35 = vector.broadcast %cst_23 : f32 to vector<2x128xf32>
    %36 = arith.addf %35, %34 : vector<2x128xf32>
    %37 = arith.divf %35, %36 : vector<2x128xf32>
    %38 = math.tanh %32 : vector<2x128xf32>
    %39 = vector.extract_strided_slice %37 {offsets = [0, 0], sizes = [2, 32], strides = [1, 1]} : vector<2x128xf32> to vector<2x32xf32>
    %40 = vector.extract_strided_slice %37 {offsets = [0, 32], sizes = [2, 32], strides = [1, 1]} : vector<2x128xf32> to vector<2x32xf32>
    %41 = vector.extract_strided_slice %38 {offsets = [0, 64], sizes = [2, 32], strides = [1, 1]} : vector<2x128xf32> to vector<2x32xf32>
    %42 = vector.extract_strided_slice %37 {offsets = [0, 96], sizes = [2, 32], strides = [1, 1]} : vector<2x128xf32> to vector<2x32xf32>
    %43 = arith.mulf %40, %25 : vector<2x32xf32>
    %44 = arith.mulf %39, %41 : vector<2x32xf32>
    %45 = arith.addf %43, %44 : vector<2x32xf32>
    %46 = math.tanh %45 : vector<2x32xf32>
    %47 = arith.mulf %42, %46 : vector<2x32xf32>
    %c2_24 = arith.constant 2 : index
    %c0_25 = arith.constant 0 : index
    %48 = vector.load %arg12[%c2_24, %c0_25] : memref<16x32xf32, #tpu.memory_space<vmem>>, vector<2x32xf32>
    tpu.vector_store %arg12[%c2_24, %c0_25], %47 {strides = array<i32>} : memref<16x32xf32, #tpu.memory_space<vmem>>, vector<2x32xf32>,
    %c4 = arith.constant 4 : index
    %c0_26 = arith.constant 0 : index
    %49 = vector.load %arg11[%c4, %c0_26] : memref<16x128xf32, #tpu.memory_space<vmem>>, vector<2x128xf32>
    %c0_27 = arith.constant 0 : index
    %c0_28 = arith.constant 0 : index
    %50 = vector.load %arg4[%c0_27, %c0_28] : memref<32x128xf32, #tpu.memory_space<vmem>>, vector<32x128xf32>
    %cst_29 = arith.constant dense<0.000000e+00> : vector<2x128xf32>
    %51 = tpu.matmul %47, %50, %cst_29 {dimension_numbers = #tpu.dot_dimension_numbers<[1], [0], [0], [1], [0, 0, 1, 1], [], []>} : vector<2x32xf32>, vector<32x128xf32>, vector<2x128xf32> -> vector<2x128xf32>
    %52 = arith.addf %49, %51 : vector<2x128xf32>
    %53 = arith.negf %52 : vector<2x128xf32>
    %54 = math.exp %53 : vector<2x128xf32>
    %cst_30 = arith.constant 1.000000e+00 : f32
    %55 = vector.broadcast %cst_30 : f32 to vector<2x128xf32>
    %56 = arith.addf %55, %54 : vector<2x128xf32>
    %57 = arith.divf %55, %56 : vector<2x128xf32>
    %58 = math.tanh %52 : vector<2x128xf32>
    %59 = vector.extract_strided_slice %57 {offsets = [0, 0], sizes = [2, 32], strides = [1, 1]} : vector<2x128xf32> to vector<2x32xf32>
    %60 = vector.extract_strided_slice %57 {offsets = [0, 32], sizes = [2, 32], strides = [1, 1]} : vector<2x128xf32> to vector<2x32xf32>
    %61 = vector.extract_strided_slice %58 {offsets = [0, 64], sizes = [2, 32], strides = [1, 1]} : vector<2x128xf32> to vector<2x32xf32>
    %62 = vector.extract_strided_slice %57 {offsets = [0, 96], sizes = [2, 32], strides = [1, 1]} : vector<2x128xf32> to vector<2x32xf32>
    %63 = arith.mulf %60, %45 : vector<2x32xf32>
    %64 = arith.mulf %59, %61 : vector<2x32xf32>
    %65 = arith.addf %63, %64 : vector<2x32xf32>
    %66 = math.tanh %65 : vector<2x32xf32>
    %67 = arith.mulf %62, %66 : vector<2x32xf32>
    %c4_31 = arith.constant 4 : index
    %c0_32 = arith.constant 0 : index
    %68 = vector.load %arg12[%c4_31, %c0_32] : memref<16x32xf32, #tpu.memory_space<vmem>>, vector<2x32xf32>
    tpu.vector_store %arg12[%c4_31, %c0_32], %67 {strides = array<i32>} : memref<16x32xf32, #tpu.memory_space<vmem>>, vector<2x32xf32>,
    %c6 = arith.constant 6 : index
    %c0_33 = arith.constant 0 : index
    %69 = vector.load %arg11[%c6, %c0_33] : memref<16x128xf32, #tpu.memory_space<vmem>>, vector<2x128xf32>
    %c0_34 = arith.constant 0 : index
    %c0_35 = arith.constant 0 : index
    %70 = vector.load %arg4[%c0_34, %c0_35] : memref<32x128xf32, #tpu.memory_space<vmem>>, vector<32x128xf32>
    %cst_36 = arith.constant dense<0.000000e+00> : vector<2x128xf32>
    %71 = tpu.matmul %67, %70, %cst_36 {dimension_numbers = #tpu.dot_dimension_numbers<[1], [0], [0], [1], [0, 0, 1, 1], [], []>} : vector<2x32xf32>, vector<32x128xf32>, vector<2x128xf32> -> vector<2x128xf32>
    %72 = arith.addf %69, %71 : vector<2x128xf32>
    %73 = arith.negf %72 : vector<2x128xf32>
    %74 = math.exp %73 : vector<2x128xf32>
    %cst_37 = arith.constant 1.000000e+00 : f32
    %75 = vector.broadcast %cst_37 : f32 to vector<2x128xf32>
    %76 = arith.addf %75, %74 : vector<2x128xf32>
    %77 = arith.divf %75, %76 : vector<2x128xf32>
    %78 = math.tanh %72 : vector<2x128xf32>
    %79 = vector.extract_strided_slice %77 {offsets = [0, 0], sizes = [2, 32], strides = [1, 1]} : vector<2x128xf32> to vector<2x32xf32>
    %80 = vector.extract_strided_slice %77 {offsets = [0, 32], sizes = [2, 32], strides = [1, 1]} : vector<2x128xf32> to vector<2x32xf32>
    %81 = vector.extract_strided_slice %78 {offsets = [0, 64], sizes = [2, 32], strides = [1, 1]} : vector<2x128xf32> to vector<2x32xf32>
    %82 = vector.extract_strided_slice %77 {offsets = [0, 96], sizes = [2, 32], strides = [1, 1]} : vector<2x128xf32> to vector<2x32xf32>
    %83 = arith.mulf %80, %65 : vector<2x32xf32>
    %84 = arith.mulf %79, %81 : vector<2x32xf32>
    %85 = arith.addf %83, %84 : vector<2x32xf32>
    %86 = math.tanh %85 : vector<2x32xf32>
    %87 = arith.mulf %82, %86 : vector<2x32xf32>
    %c6_38 = arith.constant 6 : index
    %c0_39 = arith.constant 0 : index
    %88 = vector.load %arg12[%c6_38, %c0_39] : memref<16x32xf32, #tpu.memory_space<vmem>>, vector<2x32xf32>
    tpu.vector_store %arg12[%c6_38, %c0_39], %87 {strides = array<i32>} : memref<16x32xf32, #tpu.memory_space<vmem>>, vector<2x32xf32>,
    %c8 = arith.constant 8 : index
    %c0_40 = arith.constant 0 : index
    %89 = vector.load %arg11[%c8, %c0_40] : memref<16x128xf32, #tpu.memory_space<vmem>>, vector<2x128xf32>
    %c0_41 = arith.constant 0 : index
    %c0_42 = arith.constant 0 : index
    %90 = vector.load %arg4[%c0_41, %c0_42] : memref<32x128xf32, #tpu.memory_space<vmem>>, vector<32x128xf32>
    %cst_43 = arith.constant dense<0.000000e+00> : vector<2x128xf32>
    %91 = tpu.matmul %87, %90, %cst_43 {dimension_numbers = #tpu.dot_dimension_numbers<[1], [0], [0], [1], [0, 0, 1, 1], [], []>} : vector<2x32xf32>, vector<32x128xf32>, vector<2x128xf32> -> vector<2x128xf32>
    %92 = arith.addf %89, %91 : vector<2x128xf32>
    %93 = arith.negf %92 : vector<2x128xf32>
    %94 = math.exp %93 : vector<2x128xf32>
    %cst_44 = arith.constant 1.000000e+00 : f32
    %95 = vector.broadcast %cst_44 : f32 to vector<2x128xf32>
    %96 = arith.addf %95, %94 : vector<2x128xf32>
    %97 = arith.divf %95, %96 : vector<2x128xf32>
    %98 = math.tanh %92 : vector<2x128xf32>
    %99 = vector.extract_strided_slice %97 {offsets = [0, 0], sizes = [2, 32], strides = [1, 1]} : vector<2x128xf32> to vector<2x32xf32>
    %100 = vector.extract_strided_slice %97 {offsets = [0, 32], sizes = [2, 32], strides = [1, 1]} : vector<2x128xf32> to vector<2x32xf32>
    %101 = vector.extract_strided_slice %98 {offsets = [0, 64], sizes = [2, 32], strides = [1, 1]} : vector<2x128xf32> to vector<2x32xf32>
    %102 = vector.extract_strided_slice %97 {offsets = [0, 96], sizes = [2, 32], strides = [1, 1]} : vector<2x128xf32> to vector<2x32xf32>
    %103 = arith.mulf %100, %85 : vector<2x32xf32>
    %104 = arith.mulf %99, %101 : vector<2x32xf32>
    %105 = arith.addf %103, %104 : vector<2x32xf32>
    %106 = math.tanh %105 : vector<2x32xf32>
    %107 = arith.mulf %102, %106 : vector<2x32xf32>
    %c8_45 = arith.constant 8 : index
    %c0_46 = arith.constant 0 : index
    %108 = vector.load %arg12[%c8_45, %c0_46] : memref<16x32xf32, #tpu.memory_space<vmem>>, vector<2x32xf32>
    tpu.vector_store %arg12[%c8_45, %c0_46], %107 {strides = array<i32>} : memref<16x32xf32, #tpu.memory_space<vmem>>, vector<2x32xf32>,
    %c10 = arith.constant 10 : index
    %c0_47 = arith.constant 0 : index
    %109 = vector.load %arg11[%c10, %c0_47] : memref<16x128xf32, #tpu.memory_space<vmem>>, vector<2x128xf32>
    %c0_48 = arith.constant 0 : index
    %c0_49 = arith.constant 0 : index
    %110 = vector.load %arg4[%c0_48, %c0_49] : memref<32x128xf32, #tpu.memory_space<vmem>>, vector<32x128xf32>
    %cst_50 = arith.constant dense<0.000000e+00> : vector<2x128xf32>
    %111 = tpu.matmul %107, %110, %cst_50 {dimension_numbers = #tpu.dot_dimension_numbers<[1], [0], [0], [1], [0, 0, 1, 1], [], []>} : vector<2x32xf32>, vector<32x128xf32>, vector<2x128xf32> -> vector<2x128xf32>
    %112 = arith.addf %109, %111 : vector<2x128xf32>
    %113 = arith.negf %112 : vector<2x128xf32>
    %114 = math.exp %113 : vector<2x128xf32>
    %cst_51 = arith.constant 1.000000e+00 : f32
    %115 = vector.broadcast %cst_51 : f32 to vector<2x128xf32>
    %116 = arith.addf %115, %114 : vector<2x128xf32>
    %117 = arith.divf %115, %116 : vector<2x128xf32>
    %118 = math.tanh %112 : vector<2x128xf32>
    %119 = vector.extract_strided_slice %117 {offsets = [0, 0], sizes = [2, 32], strides = [1, 1]} : vector<2x128xf32> to vector<2x32xf32>
    %120 = vector.extract_strided_slice %117 {offsets = [0, 32], sizes = [2, 32], strides = [1, 1]} : vector<2x128xf32> to vector<2x32xf32>
    %121 = vector.extract_strided_slice %118 {offsets = [0, 64], sizes = [2, 32], strides = [1, 1]} : vector<2x128xf32> to vector<2x32xf32>
    %122 = vector.extract_strided_slice %117 {offsets = [0, 96], sizes = [2, 32], strides = [1, 1]} : vector<2x128xf32> to vector<2x32xf32>
    %123 = arith.mulf %120, %105 : vector<2x32xf32>
    %124 = arith.mulf %119, %121 : vector<2x32xf32>
    %125 = arith.addf %123, %124 : vector<2x32xf32>
    %126 = math.tanh %125 : vector<2x32xf32>
    %127 = arith.mulf %122, %126 : vector<2x32xf32>
    %c10_52 = arith.constant 10 : index
    %c0_53 = arith.constant 0 : index
    %128 = vector.load %arg12[%c10_52, %c0_53] : memref<16x32xf32, #tpu.memory_space<vmem>>, vector<2x32xf32>
    tpu.vector_store %arg12[%c10_52, %c0_53], %127 {strides = array<i32>} : memref<16x32xf32, #tpu.memory_space<vmem>>, vector<2x32xf32>,
    %c12 = arith.constant 12 : index
    %c0_54 = arith.constant 0 : index
    %129 = vector.load %arg11[%c12, %c0_54] : memref<16x128xf32, #tpu.memory_space<vmem>>, vector<2x128xf32>
    %c0_55 = arith.constant 0 : index
    %c0_56 = arith.constant 0 : index
    %130 = vector.load %arg4[%c0_55, %c0_56] : memref<32x128xf32, #tpu.memory_space<vmem>>, vector<32x128xf32>
    %cst_57 = arith.constant dense<0.000000e+00> : vector<2x128xf32>
    %131 = tpu.matmul %127, %130, %cst_57 {dimension_numbers = #tpu.dot_dimension_numbers<[1], [0], [0], [1], [0, 0, 1, 1], [], []>} : vector<2x32xf32>, vector<32x128xf32>, vector<2x128xf32> -> vector<2x128xf32>
    %132 = arith.addf %129, %131 : vector<2x128xf32>
    %133 = arith.negf %132 : vector<2x128xf32>
    %134 = math.exp %133 : vector<2x128xf32>
    %cst_58 = arith.constant 1.000000e+00 : f32
    %135 = vector.broadcast %cst_58 : f32 to vector<2x128xf32>
    %136 = arith.addf %135, %134 : vector<2x128xf32>
    %137 = arith.divf %135, %136 : vector<2x128xf32>
    %138 = math.tanh %132 : vector<2x128xf32>
    %139 = vector.extract_strided_slice %137 {offsets = [0, 0], sizes = [2, 32], strides = [1, 1]} : vector<2x128xf32> to vector<2x32xf32>
    %140 = vector.extract_strided_slice %137 {offsets = [0, 32], sizes = [2, 32], strides = [1, 1]} : vector<2x128xf32> to vector<2x32xf32>
    %141 = vector.extract_strided_slice %138 {offsets = [0, 64], sizes = [2, 32], strides = [1, 1]} : vector<2x128xf32> to vector<2x32xf32>
    %142 = vector.extract_strided_slice %137 {offsets = [0, 96], sizes = [2, 32], strides = [1, 1]} : vector<2x128xf32> to vector<2x32xf32>
    %143 = arith.mulf %140, %125 : vector<2x32xf32>
    %144 = arith.mulf %139, %141 : vector<2x32xf32>
    %145 = arith.addf %143, %144 : vector<2x32xf32>
    %146 = math.tanh %145 : vector<2x32xf32>
    %147 = arith.mulf %142, %146 : vector<2x32xf32>
    %c12_59 = arith.constant 12 : index
    %c0_60 = arith.constant 0 : index
    %148 = vector.load %arg12[%c12_59, %c0_60] : memref<16x32xf32, #tpu.memory_space<vmem>>, vector<2x32xf32>
    tpu.vector_store %arg12[%c12_59, %c0_60], %147 {strides = array<i32>} : memref<16x32xf32, #tpu.memory_space<vmem>>, vector<2x32xf32>,
    %c14 = arith.constant 14 : index
    %c0_61 = arith.constant 0 : index
    %149 = vector.load %arg11[%c14, %c0_61] : memref<16x128xf32, #tpu.memory_space<vmem>>, vector<2x128xf32>
    %c0_62 = arith.constant 0 : index
    %c0_63 = arith.constant 0 : index
    %150 = vector.load %arg4[%c0_62, %c0_63] : memref<32x128xf32, #tpu.memory_space<vmem>>, vector<32x128xf32>
    %cst_64 = arith.constant dense<0.000000e+00> : vector<2x128xf32>
    %151 = tpu.matmul %147, %150, %cst_64 {dimension_numbers = #tpu.dot_dimension_numbers<[1], [0], [0], [1], [0, 0, 1, 1], [], []>} : vector<2x32xf32>, vector<32x128xf32>, vector<2x128xf32> -> vector<2x128xf32>
    %152 = arith.addf %149, %151 : vector<2x128xf32>
    %153 = arith.negf %152 : vector<2x128xf32>
    %154 = math.exp %153 : vector<2x128xf32>
    %cst_65 = arith.constant 1.000000e+00 : f32
    %155 = vector.broadcast %cst_65 : f32 to vector<2x128xf32>
    %156 = arith.addf %155, %154 : vector<2x128xf32>
    %157 = arith.divf %155, %156 : vector<2x128xf32>
    %158 = math.tanh %152 : vector<2x128xf32>
    %159 = vector.extract_strided_slice %157 {offsets = [0, 0], sizes = [2, 32], strides = [1, 1]} : vector<2x128xf32> to vector<2x32xf32>
    %160 = vector.extract_strided_slice %157 {offsets = [0, 32], sizes = [2, 32], strides = [1, 1]} : vector<2x128xf32> to vector<2x32xf32>
    %161 = vector.extract_strided_slice %158 {offsets = [0, 64], sizes = [2, 32], strides = [1, 1]} : vector<2x128xf32> to vector<2x32xf32>
    %162 = vector.extract_strided_slice %157 {offsets = [0, 96], sizes = [2, 32], strides = [1, 1]} : vector<2x128xf32> to vector<2x32xf32>
    %163 = arith.mulf %160, %145 : vector<2x32xf32>
    %164 = arith.mulf %159, %161 : vector<2x32xf32>
    %165 = arith.addf %163, %164 : vector<2x32xf32>
    %166 = math.tanh %165 : vector<2x32xf32>
    %167 = arith.mulf %162, %166 : vector<2x32xf32>
    %c14_66 = arith.constant 14 : index
    %c0_67 = arith.constant 0 : index
    %168 = vector.load %arg12[%c14_66, %c0_67] : memref<16x32xf32, #tpu.memory_space<vmem>>, vector<2x32xf32>
    tpu.vector_store %arg12[%c14_66, %c0_67], %167 {strides = array<i32>} : memref<16x32xf32, #tpu.memory_space<vmem>>, vector<2x32xf32>,
    %c0_68 = arith.constant 0 : index
    %c0_69 = arith.constant 0 : index
    %169 = vector.load %arg12[%c0_68, %c0_69] : memref<16x32xf32, #tpu.memory_space<vmem>>, vector<16x32xf32>
    %c0_70 = arith.constant 0 : index
    %c0_71 = arith.constant 0 : index
    %170 = vector.load %arg6[%c0_70, %c0_71] : memref<32x16xf32, #tpu.memory_space<vmem>>, vector<32x16xf32>
    %cst_72 = arith.constant dense<0.000000e+00> : vector<16x16xf32>
    %171 = tpu.matmul %169, %170, %cst_72 {dimension_numbers = #tpu.dot_dimension_numbers<[1], [0], [0], [1], [0, 0, 1, 1], [], []>} : vector<16x32xf32>, vector<32x16xf32>, vector<16x16xf32> -> vector<16x16xf32>
    %c0_73 = arith.constant 0 : index
    %c0_74 = arith.constant 0 : index
    %172 = vector.load %arg7[%c0_73, %c0_74] : memref<1x16xf32, #tpu.memory_space<vmem>>, vector<1x16xf32>
    %173 = vector.broadcast %172 : vector<1x16xf32> to vector<16x16xf32>
    %174 = arith.addf %171, %173 : vector<16x16xf32>
    %c0_75 = arith.constant 0 : index
    %c0_76 = arith.constant 0 : index
    %175 = vector.load %arg8[%c0_75, %c0_76] : memref<16x16xf32, #tpu.memory_space<vmem>>, vector<16x16xf32>
    tpu.vector_store %arg8[%c0_75, %c0_76], %174 {strides = array<i32>} : memref<16x16xf32, #tpu.memory_space<vmem>>, vector<16x16xf32>,
    %c0_77 = arith.constant 0 : index
    %c0_78 = arith.constant 0 : index
    %176 = vector.load %arg9[%c0_77, %c0_78] : memref<2x32xf32, #tpu.memory_space<vmem>>, vector<2x32xf32>
    tpu.vector_store %arg9[%c0_77, %c0_78], %167 {strides = array<i32>} : memref<2x32xf32, #tpu.memory_space<vmem>>, vector<2x32xf32>,
    %c0_79 = arith.constant 0 : index
    %c0_80 = arith.constant 0 : index
    %177 = vector.load %arg10[%c0_79, %c0_80] : memref<2x32xf32, #tpu.memory_space<vmem>>, vector<2x32xf32>
    tpu.vector_store %arg10[%c0_79, %c0_80], %165 {strides = array<i32>} : memref<2x32xf32, #tpu.memory_space<vmem>>, vector<2x32xf32>,
    return
  }
}

</mosaic_0001>

<llo_original>
// kernel: rnn_decoder_forward.1
$region0: #{rnn_decoder_forward.1}
  #allocation0 [shape = 'u32[]', space=smem, size = 0x4, offset = 0x4, fixed_abs, tag = 'smem constant byte address 0x4 - core index']
  #allocation1 [shape = 'u32[144,128]{1,0:T(1,128)}', space=vmem, size = 0x12000, scoped, tag = 'internal scratch']
  #allocation2 [shape = 'f32[16,128]{1,0:T(8,128)}', space=vmem, size = 0x2000, scoped, tag = 'scratch operand']
  #allocation3 [shape = 'f32[16,32]{1,0:T(8,128)}', space=vmem, size = 0x2000, scoped, tag = 'scratch operand']
  %s0 = inlined_call_operand.vmem [shape: f32[16,16], index: 0, kind: input, shape index: {}]
  %s1 = inlined_call_operand.vmem [shape: f32[2,32], index: 1, kind: input, shape index: {}]
  %s2 = inlined_call_operand.vmem [shape: f32[2,32], index: 2, kind: input, shape index: {}]
  %s3 = inlined_call_operand.vmem [shape: f32[16,128], index: 3, kind: input, shape index: {}]
  %s4 = inlined_call_operand.vmem [shape: f32[32,128], index: 4, kind: input, shape index: {}]
  %s5 = inlined_call_operand.vmem [shape: f32[1,128], index: 5, kind: input, shape index: {}]
  %s6 = inlined_call_operand.vmem [shape: f32[32,16], index: 6, kind: input, shape index: {}]
  %s7 = inlined_call_operand.vmem [shape: f32[1,16], index: 7, kind: input, shape index: {}]
  %s8 = inlined_call_operand.vmem [shape: f32[16,16], index: 8, kind: output, shape index: {0}]
  %s9 = inlined_call_operand.hbm [shape: f32[2,32], index: 9, kind: output, shape index: {1}]
  %s10 = inlined_call_operand.hbm [shape: f32[2,32], index: 10, kind: output, shape index: {2}]
  %11 = xla_tuple %s8, %s9, %s10
  %s12 = sld [smem:[#allocation0]]
  $region58: #{rnn_decoder_forward.1} parent=0
    _
  %s14 = ssub.s32 1, %s12
  %s15 = scalar_select 0, %s14, %s12
  $region1: #{rnn_decoder_forward.1} parent=0
    #allocation4 [shape = 'u8[1024]{0}', space=vmem, size = 0x400, scoped, tag = 'output window, operand 1, single buffered']
    #allocation5 [shape = 's32[1]{0}', space=sflag, size = 0x4, scoped, tag = 'scoped memory for rnn_decoder_forward.1']
    #allocation6 [shape = 'u8[1024]{0}', space=vmem, size = 0x400, scoped, tag = 'output window, operand 2, single buffered']
    #allocation7 [shape = 's32[1]{0}', space=sflag, size = 0x4, scoped, tag = 'scoped memory for rnn_decoder_forward.1']
    %16 = vsyncpa [#allocation5], 0
    %17 = vsyncpa [#allocation7], 0
    // Predicated region
    $region2: #{rnn_decoder_forward.1} parent=1 // pred_check
      _
    $region3: #{rnn_decoder_forward.1} parent=1 // pred_check_branch
      %19 = sbr.rel (0) target = $region5
    $region4: #{rnn_decoder_forward.1} parent=1 // pred_region
      _
    $region5: #{rnn_decoder_forward.1} parent=1 // pred_fallthru
      _
    // Predicated region
    $region6: #{rnn_decoder_forward.1} parent=1 // pred_check
      _
    $region7: #{rnn_decoder_forward.1} parent=1 // pred_check_branch
      %21 = sbr.rel (0) target = $region9
    $region8: #{rnn_decoder_forward.1} parent=1 // pred_region
      _
    $region9: #{rnn_decoder_forward.1} parent=1 // pred_fallthru
      _
    // Predicated region
    $region10: #{rnn_decoder_forward.1} parent=1 // pred_check
      _
    $region11: #{rnn_decoder_forward.1} parent=1 // pred_check_branch
      %23 = sbr.rel (0) target = $region13
    $region12: #{rnn_decoder_forward.1} parent=1 // pred_region
      _
    $region13: #{rnn_decoder_forward.1} parent=1 // pred_fallthru
      _
    // Predicated region
    $region14: #{rnn_decoder_forward.1} parent=1 // pred_check
      _
    $region15: #{rnn_decoder_forward.1} parent=1 // pred_check_branch
      %25 = sbr.rel (0) target = $region17
    $region16: #{rnn_decoder_forward.1} parent=1 // pred_region
      _
    $region17: #{rnn_decoder_forward.1} parent=1 // pred_fallthru
      _
    // Predicated region
    $region18: #{rnn_decoder_forward.1} parent=1 // pred_check
      _
    $region19: #{rnn_decoder_forward.1} parent=1 // pred_check_branch
      %27 = sbr.rel (0) target = $region21
    $region20: #{rnn_decoder_forward.1} parent=1 // pred_region
      _
    $region21: #{rnn_decoder_forward.1} parent=1 // pred_fallthru
      _
    // Predicated region
    $region22: #{rnn_decoder_forward.1} parent=1 // pred_check
      _
    $region23: #{rnn_decoder_forward.1} parent=1 // pred_check_branch
      %29 = sbr.rel (0) target = $region25
    $region24: #{rnn_decoder_forward.1} parent=1 // pred_region
      _
    $region25: #{rnn_decoder_forward.1} parent=1 // pred_fallthru
      _
    // Predicated region
    $region26: #{rnn_decoder_forward.1} parent=1 // pred_check
      _
    $region27: #{rnn_decoder_forward.1} parent=1 // pred_check_branch
      %31 = sbr.rel (0) target = $region29
    $region28: #{rnn_decoder_forward.1} parent=1 // pred_region
      _
    $region29: #{rnn_decoder_forward.1} parent=1 // pred_fallthru
      _
    // Predicated region
    $region30: #{rnn_decoder_forward.1} parent=1 // pred_check
      _
    $region31: #{rnn_decoder_forward.1} parent=1 // pred_check_branch
      %33 = sbr.rel (0) target = $region33
    $region32: #{rnn_decoder_forward.1} parent=1 // pred_region
      _
    $region33: #{rnn_decoder_forward.1} parent=1 // pred_fallthru
      _
    %v34 = vld [vmem:[%s0] sm:$0xff]
    %v35 = vld [vmem:[%s0 + $0x8] sm:$0xff]
    %v36 = vld [vmem:[%s3] sm:$0xff]
    %v37 = vld [vmem:[%s3 + $0x8] sm:$0xff]
    %v38 = vld [vmem:[%s5] sm:$0x1]
    %v40 = vlaneseq
    %v41 = vshrl.u32 %v40, 7
    %v42 = vsub.s32 0, %v41
    %v43 = vrot.slane %v38, %v42
    %vm45 = vcmask 130048
    %v47 = vsel %vm45, %v34, 0
    %v50 = vsel %vm45, %v35, 0
    %52 = vmatprep.subr.mxu0 0.0
    %53 = vmatpush1.msra.mxu0 0.0
    %54 = vmatprep.subr.mxu0 0.0
    %55 = vmatpush1.msra.mxu0 0.0
    %56 = vmatprep.subr.mxu0 0.0
    %57 = vmatpush1.msra.mxu0 0.0
    %58 = vmatprep.subr.mxu0 0.0
    %59 = vmatpush1.msra.mxu0 0.0
    %60 = vmatprep.subr.mxu0 0.0
    %61 = vmatpush1.msra.mxu0 0.0
    %62 = vmatprep.subr.mxu0 0.0
    %63 = vmatpush1.msra.mxu0 0.0
    %64 = vmatprep.subr.mxu0 0.0
    %65 = vmatpush1.msra.mxu0 0.0
    %66 = vmatprep.subr.mxu0 0.0
    %67 = vmatpush1.msra.mxu0 0.0
    %68 = vmatprep.subr.mxu0 0.0
    %69 = vmatpush1.msra.mxu0 0.0
    %70 = vmatprep.subr.mxu0 0.0
    %71 = vmatpush1.msra.mxu0 0.0
    %72 = vmatprep.subr.mxu0 0.0
    %73 = vmatpush1.msra.mxu0 0.0
    %74 = vmatprep.subr.mxu0 0.0
    %75 = vmatpush1.msra.mxu0 0.0
    %76 = vmatprep.subr.mxu0 0.0
    %77 = vmatpush1.msra.mxu0 0.0
    %78 = vmatprep.subr.mxu0 0.0
    %79 = vmatpush1.msra.mxu0 0.0
    %80 = vmatprep.subr.mxu0 0.0
    %81 = vmatpush1.msra.mxu0 %v37
    %82 = vmatprep.subr.mxu0 0.0
    %83 = vmatpush1.msra.mxu0 %v36
    %84 = vmatprep.subr.mxu0 0.0
    %85 = vmatpush2.msra.mxu0 0.0
    %86 = vmatprep.subr.mxu0 0.0
    %87 = vmatpush2.msra.mxu0 0.0
    %88 = vmatprep.subr.mxu0 0.0
    %89 = vmatpush2.msra.mxu0 0.0
    %90 = vmatprep.subr.mxu0 0.0
    %91 = vmatpush2.msra.mxu0 0.0
    %92 = vmatprep.subr.mxu0 0.0
    %93 = vmatpush2.msra.mxu0 0.0
    %94 = vmatprep.subr.mxu0 0.0
    %95 = vmatpush2.msra.mxu0 0.0
    %96 = vmatprep.subr.mxu0 0.0
    %97 = vmatpush2.msra.mxu0 0.0
    %98 = vmatprep.subr.mxu0 0.0
    %99 = vmatpush2.msra.mxu0 0.0
    %100 = vmatprep.subr.mxu0 0.0
    %101 = vmatpush2.msra.mxu0 0.0
    %102 = vmatprep.subr.mxu0 0.0
    %103 = vmatpush2.msra.mxu0 0.0
    %104 = vmatprep.subr.mxu0 0.0
    %105 = vmatpush2.msra.mxu0 0.0
    %106 = vmatprep.subr.mxu0 0.0
    %107 = vmatpush2.msra.mxu0 0.0
    %108 = vmatprep.subr.mxu0 0.0
    %109 = vmatpush2.msra.mxu0 0.0
    %110 = vmatprep.subr.mxu0 0.0
    %111 = vmatpush2.msra.mxu0 0.0
    %112 = vmatprep.subr.mxu0 0.0
    %113 = vmatpush2.msra.mxu0 0.0
    %114 = vmatprep.subr.mxu0 0.0
    %115 = vmatpush2.msra.mxu0 0.0
    %116 = vmatprep.mubr.f32.mxu0 0.0
    %117 = vmatmul.mubr.f32.gmra.mxu0 %v47
    %v118 = vpop.f32.mrf.mxu0
    %v119 = vadd.f32 %v43, %v118
    %v120 = vpop.f32.mrf.mxu0
    %121 = vmatprep.mubr.f32.mxu0 0.0
    %122 = vmatmul.mubr.f32.gmra.mxu0 %v50
    %v123 = vpop.f32.mrf.mxu0
    %v124 = vadd.f32 %v43, %v123
    %v125 = vpop.f32.mrf.mxu0
    %126 = vdwg.mxu0
    %127 = vst [vmem:[#allocation2] sm:$0xff] %v119
    %128 = vst [vmem:[#allocation2 + $0x8] sm:$0xff] %v124
    %v129 = vld [vmem:[%s1] sm:$0x3]
    %v130 = vld [vmem:[%s2] sm:$0x3]
    %v131 = vld [vmem:[#allocation2] sm:$0x3]
    %v132 = vld [vmem:[%s4] sm:$0xff]
    %v133 = vld [vmem:[%s4 + $0x8] sm:$0xff]
    %v134 = vld [vmem:[%s4 + $0x10] sm:$0xff]
    %v135 = vld [vmem:[%s4 + $0x18] sm:$0xff]
    %vm136 = vcmask 261120
    %v138 = vsel %vm136, %v129, 0
    %140 = vmatprep.subr.mxu0 0.0
    %141 = vmatpush1.msra.mxu0 0.0
    %142 = vmatprep.subr.mxu0 0.0
    %143 = vmatpush1.msra.mxu0 0.0
    %144 = vmatprep.subr.mxu0 0.0
    %145 = vmatpush1.msra.mxu0 0.0
    %146 = vmatprep.subr.mxu0 0.0
    %147 = vmatpush1.msra.mxu0 0.0
    %148 = vmatprep.subr.mxu0 0.0
    %149 = vmatpush1.msra.mxu0 0.0
    %150 = vmatprep.subr.mxu0 0.0
    %151 = vmatpush1.msra.mxu0 0.0
    %152 = vmatprep.subr.mxu0 0.0
    %153 = vmatpush1.msra.mxu0 0.0
    %154 = vmatprep.subr.mxu0 0.0
    %155 = vmatpush1.msra.mxu0 0.0
    %156 = vmatprep.subr.mxu0 0.0
    %157 = vmatpush1.msra.mxu0 0.0
    %158 = vmatprep.subr.mxu0 0.0
    %159 = vmatpush1.msra.mxu0 0.0
    %160 = vmatprep.subr.mxu0 0.0
    %161 = vmatpush1.msra.mxu0 0.0
    %162 = vmatprep.subr.mxu0 0.0
    %163 = vmatpush1.msra.mxu0 0.0
    %164 = vmatprep.subr.mxu0 0.0
    %165 = vmatpush1.msra.mxu0 %v135
    %166 = vmatprep.subr.mxu0 0.0
    %167 = vmatpush1.msra.mxu0 %v134
    %168 = vmatprep.subr.mxu0 0.0
    %169 = vmatpush1.msra.mxu0 %v133
    %170 = vmatprep.subr.mxu0 0.0
    %171 = vmatpush1.msra.mxu0 %v132
    %172 = vmatprep.subr.mxu0 0.0
    %173 = vmatpush2.msra.mxu0 0.0
    %174 = vmatprep.subr.mxu0 0.0
    %175 = vmatpush2.msra.mxu0 0.0
    %176 = vmatprep.subr.mxu0 0.0
    %177 = vmatpush2.msra.mxu0 0.0
    %178 = vmatprep.subr.mxu0 0.0
    %179 = vmatpush2.msra.mxu0 0.0
    %180 = vmatprep.subr.mxu0 0.0
    %181 = vmatpush2.msra.mxu0 0.0
    %182 = vmatprep.subr.mxu0 0.0
    %183 = vmatpush2.msra.mxu0 0.0
    %184 = vmatprep.subr.mxu0 0.0
    %185 = vmatpush2.msra.mxu0 0.0
    %186 = vmatprep.subr.mxu0 0.0
    %187 = vmatpush2.msra.mxu0 0.0
    %188 = vmatprep.subr.mxu0 0.0
    %189 = vmatpush2.msra.mxu0 0.0
    %190 = vmatprep.subr.mxu0 0.0
    %191 = vmatpush2.msra.mxu0 0.0
    %192 = vmatprep.subr.mxu0 0.0
    %193 = vmatpush2.msra.mxu0 0.0
    %194 = vmatprep.subr.mxu0 0.0
    %195 = vmatpush2.msra.mxu0 0.0
    %196 = vmatprep.subr.mxu0 0.0
    %197 = vmatpush2.msra.mxu0 0.0
    %198 = vmatprep.subr.mxu0 0.0
    %199 = vmatpush2.msra.mxu0 0.0
    %200 = vmatprep.subr.mxu0 0.0
    %201 = vmatpush2.msra.mxu0 0.0
    %202 = vmatprep.subr.mxu0 0.0
    %203 = vmatpush2.msra.mxu0 0.0
    %204 = vmatprep.mubr.f32.mxu0 0.0
    %205 = vmatmul.mubr.f32.gmra.mxu0 %v138
    %v206 = vpop.f32.mrf.mxu0
    %v207 = vadd.f32 0.0, %v206
    %v208 = vpop.f32.mrf.mxu0
    %209 = vdwg.mxu0
    %v210 = vadd.f32 %v131, %v207
    %v211 = vxor.u32 %v210, 2147483648
    %v212 = vmul.f32 %v211, 1.442695
    %v213 = vpow.pop %v212
    %v214 = vadd.f32 %v213, 1.0
    %v215 = vrcp.pop %v214
    %v216 = vmul.f32 1.0, %v215
    %v217 = vtanh.pop %v210
    %219 = vrot.lane.b32.xlu0 %v130, 32
    %v220 = vpop.permute.xlu0 %219
    %v222 = vmul.f32 %v216, %v220
    %224 = vrot.lane.b32.xlu0 %v217, 64
    %v225 = vpop.permute.xlu0 %224
    %v227 = vmul.f32 %v216, %v225
    %229 = vrot.lane.b32.xlu0 %v227, 32
    %v230 = vpop.permute.xlu0 %229
    %v232 = vadd.f32 %v222, %v230
    %v233 = vtanh.pop %v232
    %235 = vrot.lane.b32.xlu0 %v233, 64
    %v236 = vpop.permute.xlu0 %235
    %v238 = vmul.f32 %v216, %v236
    %240 = vrot.lane.b32.xlu0 %v238, 32
    %v241 = vpop.permute.xlu0 %240
    %vm243 = vcmask 254976
    %244 = vst.msk [vmem:[#allocation3] sm:$0x3] %vm243, %v241
    %v245 = vld [vmem:[#allocation2 + $0x2] sm:$0x3]
    %v246 = vld [vmem:[%s4] sm:$0xff]
    %v247 = vld [vmem:[%s4 + $0x8] sm:$0xff]
    %v248 = vld [vmem:[%s4 + $0x10] sm:$0xff]
    %v249 = vld [vmem:[%s4 + $0x18] sm:$0xff]
    %v250 = vsel %vm136, %v241, 0
    %252 = vmatprep.subr.mxu0 0.0
    %253 = vmatpush1.msra.mxu0 0.0
    %254 = vmatprep.subr.mxu0 0.0
    %255 = vmatpush1.msra.mxu0 0.0
    %256 = vmatprep.subr.mxu0 0.0
    %257 = vmatpush1.msra.mxu0 0.0
    %258 = vmatprep.subr.mxu0 0.0
    %259 = vmatpush1.msra.mxu0 0.0
    %260 = vmatprep.subr.mxu0 0.0
    %261 = vmatpush1.msra.mxu0 0.0
    %262 = vmatprep.subr.mxu0 0.0
    %263 = vmatpush1.msra.mxu0 0.0
    %264 = vmatprep.subr.mxu0 0.0
    %265 = vmatpush1.msra.mxu0 0.0
    %266 = vmatprep.subr.mxu0 0.0
    %267 = vmatpush1.msra.mxu0 0.0
    %268 = vmatprep.subr.mxu0 0.0
    %269 = vmatpush1.msra.mxu0 0.0
    %270 = vmatprep.subr.mxu0 0.0
    %271 = vmatpush1.msra.mxu0 0.0
    %272 = vmatprep.subr.mxu0 0.0
    %273 = vmatpush1.msra.mxu0 0.0
    %274 = vmatprep.subr.mxu0 0.0
    %275 = vmatpush1.msra.mxu0 0.0
    %276 = vmatprep.subr.mxu0 0.0
    %277 = vmatpush1.msra.mxu0 %v249
    %278 = vmatprep.subr.mxu0 0.0
    %279 = vmatpush1.msra.mxu0 %v248
    %280 = vmatprep.subr.mxu0 0.0
    %281 = vmatpush1.msra.mxu0 %v247
    %282 = vmatprep.subr.mxu0 0.0
    %283 = vmatpush1.msra.mxu0 %v246
    %284 = vmatprep.subr.mxu0 0.0
    %285 = vmatpush2.msra.mxu0 0.0
    %286 = vmatprep.subr.mxu0 0.0
    %287 = vmatpush2.msra.mxu0 0.0
    %288 = vmatprep.subr.mxu0 0.0
    %289 = vmatpush2.msra.mxu0 0.0
    %290 = vmatprep.subr.mxu0 0.0
    %291 = vmatpush2.msra.mxu0 0.0
    %292 = vmatprep.subr.mxu0 0.0
    %293 = vmatpush2.msra.mxu0 0.0
    %294 = vmatprep.subr.mxu0 0.0
    %295 = vmatpush2.msra.mxu0 0.0
    %296 = vmatprep.subr.mxu0 0.0
    %297 = vmatpush2.msra.mxu0 0.0
    %298 = vmatprep.subr.mxu0 0.0
    %299 = vmatpush2.msra.mxu0 0.0
    %300 = vmatprep.subr.mxu0 0.0
    %301 = vmatpush2.msra.mxu0 0.0
    %302 = vmatprep.subr.mxu0 0.0
    %303 = vmatpush2.msra.mxu0 0.0
    %304 = vmatprep.subr.mxu0 0.0
    %305 = vmatpush2.msra.mxu0 0.0
    %306 = vmatprep.subr.mxu0 0.0
    %307 = vmatpush2.msra.mxu0 0.0
    %308 = vmatprep.subr.mxu0 0.0
    %309 = vmatpush2.msra.mxu0 0.0
    %310 = vmatprep.subr.mxu0 0.0
    %311 = vmatpush2.msra.mxu0 0.0
    %312 = vmatprep.subr.mxu0 0.0
    %313 = vmatpush2.msra.mxu0 0.0
    %314 = vmatprep.subr.mxu0 0.0
    %315 = vmatpush2.msra.mxu0 0.0
    %316 = vmatprep.mubr.f32.mxu0 0.0
    %317 = vmatmul.mubr.f32.gmra.mxu0 %v250
    %v318 = vpop.f32.mrf.mxu0
    %v319 = vadd.f32 0.0, %v318
    %v320 = vpop.f32.mrf.mxu0
    %321 = vdwg.mxu0
    %v322 = vadd.f32 %v245, %v319
    %v323 = vxor.u32 %v322, 2147483648
    %v324 = vmul.f32 %v323, 1.442695
    %v325 = vpow.pop %v324
    %v326 = vadd.f32 %v325, 1.0
    %v327 = vrcp.pop %v326
    %v328 = vmul.f32 1.0, %v327
    %v329 = vtanh.pop %v322
    %v330 = vmul.f32 %v328, %v232
    %332 = vrot.lane.b32.xlu0 %v329, 64
    %v333 = vpop.permute.xlu0 %332
    %v335 = vmul.f32 %v328, %v333
    %337 = vrot.lane.b32.xlu0 %v335, 32
    %v338 = vpop.permute.xlu0 %337
    %v340 = vadd.f32 %v330, %v338
    %v341 = vtanh.pop %v340
    %343 = vrot.lane.b32.xlu0 %v341, 64
    %v344 = vpop.permute.xlu0 %343
    %v346 = vmul.f32 %v328, %v344
    %348 = vrot.lane.b32.xlu0 %v346, 32
    %v349 = vpop.permute.xlu0 %348
    %351 = vst.msk [vmem:[#allocation3 + $0x2] sm:$0x3] %vm243, %v349
    %v352 = vld [vmem:[#allocation2 + $0x4] sm:$0x3]
    %v353 = vld [vmem:[%s4] sm:$0xff]
    %v354 = vld [vmem:[%s4 + $0x8] sm:$0xff]
    %v355 = vld [vmem:[%s4 + $0x10] sm:$0xff]
    %v356 = vld [vmem:[%s4 + $0x18] sm:$0xff]
    %v357 = vsel %vm136, %v349, 0
    %359 = vmatprep.subr.mxu0 0.0
    %360 = vmatpush1.msra.mxu0 0.0
    %361 = vmatprep.subr.mxu0 0.0
    %362 = vmatpush1.msra.mxu0 0.0
    %363 = vmatprep.subr.mxu0 0.0
    %364 = vmatpush1.msra.mxu0 0.0
    %365 = vmatprep.subr.mxu0 0.0
    %366 = vmatpush1.msra.mxu0 0.0
    %367 = vmatprep.subr.mxu0 0.0
    %368 = vmatpush1.msra.mxu0 0.0
    %369 = vmatprep.subr.mxu0 0.0
    %370 = vmatpush1.msra.mxu0 0.0
    %371 = vmatprep.subr.mxu0 0.0
    %372 = vmatpush1.msra.mxu0 0.0
    %373 = vmatprep.subr.mxu0 0.0
    %374 = vmatpush1.msra.mxu0 0.0
    %375 = vmatprep.subr.mxu0 0.0
    %376 = vmatpush1.msra.mxu0 0.0
    %377 = vmatprep.subr.mxu0 0.0
    %378 = vmatpush1.msra.mxu0 0.0
    %379 = vmatprep.subr.mxu0 0.0
    %380 = vmatpush1.msra.mxu0 0.0
    %381 = vmatprep.subr.mxu0 0.0
    %382 = vmatpush1.msra.mxu0 0.0
    %383 = vmatprep.subr.mxu0 0.0
    %384 = vmatpush1.msra.mxu0 %v356
    %385 = vmatprep.subr.mxu0 0.0
    %386 = vmatpush1.msra.mxu0 %v355
    %387 = vmatprep.subr.mxu0 0.0
    %388 = vmatpush1.msra.mxu0 %v354
    %389 = vmatprep.subr.mxu0 0.0
    %390 = vmatpush1.msra.mxu0 %v353
    %391 = vmatprep.subr.mxu0 0.0
    %392 = vmatpush2.msra.mxu0 0.0
    %393 = vmatprep.subr.mxu0 0.0
    %394 = vmatpush2.msra.mxu0 0.0
    %395 = vmatprep.subr.mxu0 0.0
    %396 = vmatpush2.msra.mxu0 0.0
    %397 = vmatprep.subr.mxu0 0.0
    %398 = vmatpush2.msra.mxu0 0.0
    %399 = vmatprep.subr.mxu0 0.0
    %400 = vmatpush2.msra.mxu0 0.0
    %401 = vmatprep.subr.mxu0 0.0
    %402 = vmatpush2.msra.mxu0 0.0
    %403 = vmatprep.subr.mxu0 0.0
    %404 = vmatpush2.msra.mxu0 0.0
    %405 = vmatprep.subr.mxu0 0.0
    %406 = vmatpush2.msra.mxu0 0.0
    %407 = vmatprep.subr.mxu0 0.0
    %408 = vmatpush2.msra.mxu0 0.0
    %409 = vmatprep.subr.mxu0 0.0
    %410 = vmatpush2.msra.mxu0 0.0
    %411 = vmatprep.subr.mxu0 0.0
    %412 = vmatpush2.msra.mxu0 0.0
    %413 = vmatprep.subr.mxu0 0.0
    %414 = vmatpush2.msra.mxu0 0.0
    %415 = vmatprep.subr.mxu0 0.0
    %416 = vmatpush2.msra.mxu0 0.0
    %417 = vmatprep.subr.mxu0 0.0
    %418 = vmatpush2.msra.mxu0 0.0
    %419 = vmatprep.subr.mxu0 0.0
    %420 = vmatpush2.msra.mxu0 0.0
    %421 = vmatprep.subr.mxu0 0.0
    %422 = vmatpush2.msra.mxu0 0.0
    %423 = vmatprep.mubr.f32.mxu0 0.0
    %424 = vmatmul.mubr.f32.gmra.mxu0 %v357
    %v425 = vpop.f32.mrf.mxu0
    %v426 = vadd.f32 0.0, %v425
    %v427 = vpop.f32.mrf.mxu0
    %428 = vdwg.mxu0
    %v429 = vadd.f32 %v352, %v426
    %v430 = vxor.u32 %v429, 2147483648
    %v431 = vmul.f32 %v430, 1.442695
    %v432 = vpow.pop %v431
    %v433 = vadd.f32 %v432, 1.0
    %v434 = vrcp.pop %v433
    %v435 = vmul.f32 1.0, %v434
    %v436 = vtanh.pop %v429
    %v437 = vmul.f32 %v435, %v340
    %439 = vrot.lane.b32.xlu0 %v436, 64
    %v440 = vpop.permute.xlu0 %439
    %v442 = vmul.f32 %v435, %v440
    %444 = vrot.lane.b32.xlu0 %v442, 32
    %v445 = vpop.permute.xlu0 %444
    %v447 = vadd.f32 %v437, %v445
    %v448 = vtanh.pop %v447
    %450 = vrot.lane.b32.xlu0 %v448, 64
    %v451 = vpop.permute.xlu0 %450
    %v453 = vmul.f32 %v435, %v451
    %455 = vrot.lane.b32.xlu0 %v453, 32
    %v456 = vpop.permute.xlu0 %455
    %458 = vst.msk [vmem:[#allocation3 + $0x4] sm:$0x3] %vm243, %v456
    %v459 = vld [vmem:[#allocation2 + $0x6] sm:$0x3]
    %v460 = vld [vmem:[%s4] sm:$0xff]
    %v461 = vld [vmem:[%s4 + $0x8] sm:$0xff]
    %v462 = vld [vmem:[%s4 + $0x10] sm:$0xff]
    %v463 = vld [vmem:[%s4 + $0x18] sm:$0xff]
    %v464 = vsel %vm136, %v456, 0
    %466 = vmatprep.subr.mxu0 0.0
    %467 = vmatpush1.msra.mxu0 0.0
    %468 = vmatprep.subr.mxu0 0.0
    %469 = vmatpush1.msra.mxu0 0.0
    %470 = vmatprep.subr.mxu0 0.0
    %471 = vmatpush1.msra.mxu0 0.0
    %472 = vmatprep.subr.mxu0 0.0
    %473 = vmatpush1.msra.mxu0 0.0
    %474 = vmatprep.subr.mxu0 0.0
    %475 = vmatpush1.msra.mxu0 0.0
    %476 = vmatprep.subr.mxu0 0.0
    %477 = vmatpush1.msra.mxu0 0.0
    %478 = vmatprep.subr.mxu0 0.0
    %479 = vmatpush1.msra.mxu0 0.0
    %480 = vmatprep.subr.mxu0 0.0
    %481 = vmatpush1.msra.mxu0 0.0
    %482 = vmatprep.subr.mxu0 0.0
    %483 = vmatpush1.msra.mxu0 0.0
    %484 = vmatprep.subr.mxu0 0.0
    %485 = vmatpush1.msra.mxu0 0.0
    %486 = vmatprep.subr.mxu0 0.0
    %487 = vmatpush1.msra.mxu0 0.0
    %488 = vmatprep.subr.mxu0 0.0
    %489 = vmatpush1.msra.mxu0 0.0
    %490 = vmatprep.subr.mxu0 0.0
    %491 = vmatpush1.msra.mxu0 %v463
    %492 = vmatprep.subr.mxu0 0.0
    %493 = vmatpush1.msra.mxu0 %v462
    %494 = vmatprep.subr.mxu0 0.0
    %495 = vmatpush1.msra.mxu0 %v461
    %496 = vmatprep.subr.mxu0 0.0
    %497 = vmatpush1.msra.mxu0 %v460
    %498 = vmatprep.subr.mxu0 0.0
    %499 = vmatpush2.msra.mxu0 0.0
    %500 = vmatprep.subr.mxu0 0.0
    %501 = vmatpush2.msra.mxu0 0.0
    %502 = vmatprep.subr.mxu0 0.0
    %503 = vmatpush2.msra.mxu0 0.0
    %504 = vmatprep.subr.mxu0 0.0
    %505 = vmatpush2.msra.mxu0 0.0
    %506 = vmatprep.subr.mxu0 0.0
    %507 = vmatpush2.msra.mxu0 0.0
    %508 = vmatprep.subr.mxu0 0.0
    %509 = vmatpush2.msra.mxu0 0.0
    %510 = vmatprep.subr.mxu0 0.0
    %511 = vmatpush2.msra.mxu0 0.0
    %512 = vmatprep.subr.mxu0 0.0
    %513 = vmatpush2.msra.mxu0 0.0
    %514 = vmatprep.subr.mxu0 0.0
    %515 = vmatpush2.msra.mxu0 0.0
    %516 = vmatprep.subr.mxu0 0.0
    %517 = vmatpush2.msra.mxu0 0.0
    %518 = vmatprep.subr.mxu0 0.0
    %519 = vmatpush2.msra.mxu0 0.0
    %520 = vmatprep.subr.mxu0 0.0
    %521 = vmatpush2.msra.mxu0 0.0
    %522 = vmatprep.subr.mxu0 0.0
    %523 = vmatpush2.msra.mxu0 0.0
    %524 = vmatprep.subr.mxu0 0.0
    %525 = vmatpush2.msra.mxu0 0.0
    %526 = vmatprep.subr.mxu0 0.0
    %527 = vmatpush2.msra.mxu0 0.0
    %528 = vmatprep.subr.mxu0 0.0
    %529 = vmatpush2.msra.mxu0 0.0
    %530 = vmatprep.mubr.f32.mxu0 0.0
    %531 = vmatmul.mubr.f32.gmra.mxu0 %v464
    %v532 = vpop.f32.mrf.mxu0
    %v533 = vadd.f32 0.0, %v532
    %v534 = vpop.f32.mrf.mxu0
    %535 = vdwg.mxu0
    %v536 = vadd.f32 %v459, %v533
    %v537 = vxor.u32 %v536, 2147483648
    %v538 = vmul.f32 %v537, 1.442695
    %v539 = vpow.pop %v538
    %v540 = vadd.f32 %v539, 1.0
    %v541 = vrcp.pop %v540
    %v542 = vmul.f32 1.0, %v541
    %v543 = vtanh.pop %v536
    %v544 = vmul.f32 %v542, %v447
    %546 = vrot.lane.b32.xlu0 %v543, 64
    %v547 = vpop.permute.xlu0 %546
    %v549 = vmul.f32 %v542, %v547
    %551 = vrot.lane.b32.xlu0 %v549, 32
    %v552 = vpop.permute.xlu0 %551
    %v554 = vadd.f32 %v544, %v552
    %v555 = vtanh.pop %v554
    %557 = vrot.lane.b32.xlu0 %v555, 64
    %v558 = vpop.permute.xlu0 %557
    %v560 = vmul.f32 %v542, %v558
    %562 = vrot.lane.b32.xlu0 %v560, 32
    %v563 = vpop.permute.xlu0 %562
    %565 = vst.msk [vmem:[#allocation3 + $0x6] sm:$0x3] %vm243, %v563
    %v566 = vld [vmem:[#allocation2 + $0x8] sm:$0x3]
    %v567 = vld [vmem:[%s4] sm:$0xff]
    %v568 = vld [vmem:[%s4 + $0x8] sm:$0xff]
    %v569 = vld [vmem:[%s4 + $0x10] sm:$0xff]
    %v570 = vld [vmem:[%s4 + $0x18] sm:$0xff]
    %v571 = vsel %vm136, %v563, 0
    %573 = vmatprep.subr.mxu0 0.0
    %574 = vmatpush1.msra.mxu0 0.0
    %575 = vmatprep.subr.mxu0 0.0
    %576 = vmatpush1.msra.mxu0 0.0
    %577 = vmatprep.subr.mxu0 0.0
    %578 = vmatpush1.msra.mxu0 0.0
    %579 = vmatprep.subr.mxu0 0.0
    %580 = vmatpush1.msra.mxu0 0.0
    %581 = vmatprep.subr.mxu0 0.0
    %582 = vmatpush1.msra.mxu0 0.0
    %583 = vmatprep.subr.mxu0 0.0
    %584 = vmatpush1.msra.mxu0 0.0
    %585 = vmatprep.subr.mxu0 0.0
    %586 = vmatpush1.msra.mxu0 0.0
    %587 = vmatprep.subr.mxu0 0.0
    %588 = vmatpush1.msra.mxu0 0.0
    %589 = vmatprep.subr.mxu0 0.0
    %590 = vmatpush1.msra.mxu0 0.0
    %591 = vmatprep.subr.mxu0 0.0
    %592 = vmatpush1.msra.mxu0 0.0
    %593 = vmatprep.subr.mxu0 0.0
    %594 = vmatpush1.msra.mxu0 0.0
    %595 = vmatprep.subr.mxu0 0.0
    %596 = vmatpush1.msra.mxu0 0.0
    %597 = vmatprep.subr.mxu0 0.0
    %598 = vmatpush1.msra.mxu0 %v570
    %599 = vmatprep.subr.mxu0 0.0
    %600 = vmatpush1.msra.mxu0 %v569
    %601 = vmatprep.subr.mxu0 0.0
    %602 = vmatpush1.msra.mxu0 %v568
    %603 = vmatprep.subr.mxu0 0.0
    %604 = vmatpush1.msra.mxu0 %v567
    %605 = vmatprep.subr.mxu0 0.0
    %606 = vmatpush2.msra.mxu0 0.0
    %607 = vmatprep.subr.mxu0 0.0
    %608 = vmatpush2.msra.mxu0 0.0
    %609 = vmatprep.subr.mxu0 0.0
    %610 = vmatpush2.msra.mxu0 0.0
    %611 = vmatprep.subr.mxu0 0.0
    %612 = vmatpush2.msra.mxu0 0.0
    %613 = vmatprep.subr.mxu0 0.0
    %614 = vmatpush2.msra.mxu0 0.0
    %615 = vmatprep.subr.mxu0 0.0
    %616 = vmatpush2.msra.mxu0 0.0
    %617 = vmatprep.subr.mxu0 0.0
    %618 = vmatpush2.msra.mxu0 0.0
    %619 = vmatprep.subr.mxu0 0.0
    %620 = vmatpush2.msra.mxu0 0.0
    %621 = vmatprep.subr.mxu0 0.0
    %622 = vmatpush2.msra.mxu0 0.0
    %623 = vmatprep.subr.mxu0 0.0
    %624 = vmatpush2.msra.mxu0 0.0
    %625 = vmatprep.subr.mxu0 0.0
    %626 = vmatpush2.msra.mxu0 0.0
    %627 = vmatprep.subr.mxu0 0.0
    %628 = vmatpush2.msra.mxu0 0.0
    %629 = vmatprep.subr.mxu0 0.0
    %630 = vmatpush2.msra.mxu0 0.0
    %631 = vmatprep.subr.mxu0 0.0
    %632 = vmatpush2.msra.mxu0 0.0
    %633 = vmatprep.subr.mxu0 0.0
    %634 = vmatpush2.msra.mxu0 0.0
    %635 = vmatprep.subr.mxu0 0.0
    %636 = vmatpush2.msra.mxu0 0.0
    %637 = vmatprep.mubr.f32.mxu0 0.0
    %638 = vmatmul.mubr.f32.gmra.mxu0 %v571
    %v639 = vpop.f32.mrf.mxu0
    %v640 = vadd.f32 0.0, %v639
    %v641 = vpop.f32.mrf.mxu0
    %642 = vdwg.mxu0
    %v643 = vadd.f32 %v566, %v640
    %v644 = vxor.u32 %v643, 2147483648
    %v645 = vmul.f32 %v644, 1.442695
    %v646 = vpow.pop %v645
    %v647 = vadd.f32 %v646, 1.0
    %v648 = vrcp.pop %v647
    %v649 = vmul.f32 1.0, %v648
    %v650 = vtanh.pop %v643
    %v651 = vmul.f32 %v649, %v554
    %653 = vrot.lane.b32.xlu0 %v650, 64
    %v654 = vpop.permute.xlu0 %653
    %v656 = vmul.f32 %v649, %v654
    %658 = vrot.lane.b32.xlu0 %v656, 32
    %v659 = vpop.permute.xlu0 %658
    %v661 = vadd.f32 %v651, %v659
    %v662 = vtanh.pop %v661
    %664 = vrot.lane.b32.xlu0 %v662, 64
    %v665 = vpop.permute.xlu0 %664
    %v667 = vmul.f32 %v649, %v665
    %669 = vrot.lane.b32.xlu0 %v667, 32
    %v670 = vpop.permute.xlu0 %669
    %672 = vst.msk [vmem:[#allocation3 + $0x8] sm:$0x3] %vm243, %v670
    %v673 = vld [vmem:[#allocation2 + $0xa] sm:$0x3]
    %v674 = vld [vmem:[%s4] sm:$0xff]
    %v675 = vld [vmem:[%s4 + $0x8] sm:$0xff]
    %v676 = vld [vmem:[%s4 + $0x10] sm:$0xff]
    %v677 = vld [vmem:[%s4 + $0x18] sm:$0xff]
    %v678 = vsel %vm136, %v670, 0
    %680 = vmatprep.subr.mxu0 0.0
    %681 = vmatpush1.msra.mxu0 0.0
    %682 = vmatprep.subr.mxu0 0.0
    %683 = vmatpush1.msra.mxu0 0.0
    %684 = vmatprep.subr.mxu0 0.0
    %685 = vmatpush1.msra.mxu0 0.0
    %686 = vmatprep.subr.mxu0 0.0
    %687 = vmatpush1.msra.mxu0 0.0
    %688 = vmatprep.subr.mxu0 0.0
    %689 = vmatpush1.msra.mxu0 0.0
    %690 = vmatprep.subr.mxu0 0.0
    %691 = vmatpush1.msra.mxu0 0.0
    %692 = vmatprep.subr.mxu0 0.0
    %693 = vmatpush1.msra.mxu0 0.0
    %694 = vmatprep.subr.mxu0 0.0
    %695 = vmatpush1.msra.mxu0 0.0
    %696 = vmatprep.subr.mxu0 0.0
    %697 = vmatpush1.msra.mxu0 0.0
    %698 = vmatprep.subr.mxu0 0.0
    %699 = vmatpush1.msra.mxu0 0.0
    %700 = vmatprep.subr.mxu0 0.0
    %701 = vmatpush1.msra.mxu0 0.0
    %702 = vmatprep.subr.mxu0 0.0
    %703 = vmatpush1.msra.mxu0 0.0
    %704 = vmatprep.subr.mxu0 0.0
    %705 = vmatpush1.msra.mxu0 %v677
    %706 = vmatprep.subr.mxu0 0.0
    %707 = vmatpush1.msra.mxu0 %v676
    %708 = vmatprep.subr.mxu0 0.0
    %709 = vmatpush1.msra.mxu0 %v675
    %710 = vmatprep.subr.mxu0 0.0
    %711 = vmatpush1.msra.mxu0 %v674
    %712 = vmatprep.subr.mxu0 0.0
    %713 = vmatpush2.msra.mxu0 0.0
    %714 = vmatprep.subr.mxu0 0.0
    %715 = vmatpush2.msra.mxu0 0.0
    %716 = vmatprep.subr.mxu0 0.0
    %717 = vmatpush2.msra.mxu0 0.0
    %718 = vmatprep.subr.mxu0 0.0
    %719 = vmatpush2.msra.mxu0 0.0
    %720 = vmatprep.subr.mxu0 0.0
    %721 = vmatpush2.msra.mxu0 0.0
    %722 = vmatprep.subr.mxu0 0.0
    %723 = vmatpush2.msra.mxu0 0.0
    %724 = vmatprep.subr.mxu0 0.0
    %725 = vmatpush2.msra.mxu0 0.0
    %726 = vmatprep.subr.mxu0 0.0
    %727 = vmatpush2.msra.mxu0 0.0
    %728 = vmatprep.subr.mxu0 0.0
    %729 = vmatpush2.msra.mxu0 0.0
    %730 = vmatprep.subr.mxu0 0.0
    %731 = vmatpush2.msra.mxu0 0.0
    %732 = vmatprep.subr.mxu0 0.0
    %733 = vmatpush2.msra.mxu0 0.0
    %734 = vmatprep.subr.mxu0 0.0
    %735 = vmatpush2.msra.mxu0 0.0
    %736 = vmatprep.subr.mxu0 0.0
    %737 = vmatpush2.msra.mxu0 0.0
    %738 = vmatprep.subr.mxu0 0.0
    %739 = vmatpush2.msra.mxu0 0.0
    %740 = vmatprep.subr.mxu0 0.0
    %741 = vmatpush2.msra.mxu0 0.0
    %742 = vmatprep.subr.mxu0 0.0
    %743 = vmatpush2.msra.mxu0 0.0
    %744 = vmatprep.mubr.f32.mxu0 0.0
    %745 = vmatmul.mubr.f32.gmra.mxu0 %v678
    %v746 = vpop.f32.mrf.mxu0
    %v747 = vadd.f32 0.0, %v746
    %v748 = vpop.f32.mrf.mxu0
    %749 = vdwg.mxu0
    %v750 = vadd.f32 %v673, %v747
    %v751 = vxor.u32 %v750, 2147483648
    %v752 = vmul.f32 %v751, 1.442695
    %v753 = vpow.pop %v752
    %v754 = vadd.f32 %v753, 1.0
    %v755 = vrcp.pop %v754
    %v756 = vmul.f32 1.0, %v755
    %v757 = vtanh.pop %v750
    %v758 = vmul.f32 %v756, %v661
    %760 = vrot.lane.b32.xlu0 %v757, 64
    %v761 = vpop.permute.xlu0 %760
    %v763 = vmul.f32 %v756, %v761
    %765 = vrot.lane.b32.xlu0 %v763, 32
    %v766 = vpop.permute.xlu0 %765
    %v768 = vadd.f32 %v758, %v766
    %v769 = vtanh.pop %v768
    %771 = vrot.lane.b32.xlu0 %v769, 64
    %v772 = vpop.permute.xlu0 %771
    %v774 = vmul.f32 %v756, %v772
    %776 = vrot.lane.b32.xlu0 %v774, 32
    %v777 = vpop.permute.xlu0 %776
    %779 = vst.msk [vmem:[#allocation3 + $0xa] sm:$0x3] %vm243, %v777
    %v780 = vld [vmem:[#allocation2 + $0xc] sm:$0x3]
    %v781 = vld [vmem:[%s4] sm:$0xff]
    %v782 = vld [vmem:[%s4 + $0x8] sm:$0xff]
    %v783 = vld [vmem:[%s4 + $0x10] sm:$0xff]
    %v784 = vld [vmem:[%s4 + $0x18] sm:$0xff]
    %v785 = vsel %vm136, %v777, 0
    %787 = vmatprep.subr.mxu0 0.0
    %788 = vmatpush1.msra.mxu0 0.0
    %789 = vmatprep.subr.mxu0 0.0
    %790 = vmatpush1.msra.mxu0 0.0
    %791 = vmatprep.subr.mxu0 0.0
    %792 = vmatpush1.msra.mxu0 0.0
    %793 = vmatprep.subr.mxu0 0.0
    %794 = vmatpush1.msra.mxu0 0.0
    %795 = vmatprep.subr.mxu0 0.0
    %796 = vmatpush1.msra.mxu0 0.0
    %797 = vmatprep.subr.mxu0 0.0
    %798 = vmatpush1.msra.mxu0 0.0
    %799 = vmatprep.subr.mxu0 0.0
    %800 = vmatpush1.msra.mxu0 0.0
    %801 = vmatprep.subr.mxu0 0.0
    %802 = vmatpush1.msra.mxu0 0.0
    %803 = vmatprep.subr.mxu0 0.0
    %804 = vmatpush1.msra.mxu0 0.0
    %805 = vmatprep.subr.mxu0 0.0
    %806 = vmatpush1.msra.mxu0 0.0
    %807 = vmatprep.subr.mxu0 0.0
    %808 = vmatpush1.msra.mxu0 0.0
    %809 = vmatprep.subr.mxu0 0.0
    %810 = vmatpush1.msra.mxu0 0.0
    %811 = vmatprep.subr.mxu0 0.0
    %812 = vmatpush1.msra.mxu0 %v784
    %813 = vmatprep.subr.mxu0 0.0
    %814 = vmatpush1.msra.mxu0 %v783
    %815 = vmatprep.subr.mxu0 0.0
    %816 = vmatpush1.msra.mxu0 %v782
    %817 = vmatprep.subr.mxu0 0.0
    %818 = vmatpush1.msra.mxu0 %v781
    %819 = vmatprep.subr.mxu0 0.0
    %820 = vmatpush2.msra.mxu0 0.0
    %821 = vmatprep.subr.mxu0 0.0
    %822 = vmatpush2.msra.mxu0 0.0
    %823 = vmatprep.subr.mxu0 0.0
    %824 = vmatpush2.msra.mxu0 0.0
    %825 = vmatprep.subr.mxu0 0.0
    %826 = vmatpush2.msra.mxu0 0.0
    %827 = vmatprep.subr.mxu0 0.0
    %828 = vmatpush2.msra.mxu0 0.0
    %829 = vmatprep.subr.mxu0 0.0
    %830 = vmatpush2.msra.mxu0 0.0
    %831 = vmatprep.subr.mxu0 0.0
    %832 = vmatpush2.msra.mxu0 0.0
    %833 = vmatprep.subr.mxu0 0.0
    %834 = vmatpush2.msra.mxu0 0.0
    %835 = vmatprep.subr.mxu0 0.0
    %836 = vmatpush2.msra.mxu0 0.0
    %837 = vmatprep.subr.mxu0 0.0
    %838 = vmatpush2.msra.mxu0 0.0
    %839 = vmatprep.subr.mxu0 0.0
    %840 = vmatpush2.msra.mxu0 0.0
    %841 = vmatprep.subr.mxu0 0.0
    %842 = vmatpush2.msra.mxu0 0.0
    %843 = vmatprep.subr.mxu0 0.0
    %844 = vmatpush2.msra.mxu0 0.0
    %845 = vmatprep.subr.mxu0 0.0
    %846 = vmatpush2.msra.mxu0 0.0
    %847 = vmatprep.subr.mxu0 0.0
    %848 = vmatpush2.msra.mxu0 0.0
    %849 = vmatprep.subr.mxu0 0.0
    %850 = vmatpush2.msra.mxu0 0.0
    %851 = vmatprep.mubr.f32.mxu0 0.0
    %852 = vmatmul.mubr.f32.gmra.mxu0 %v785
    %v853 = vpop.f32.mrf.mxu0
    %v854 = vadd.f32 0.0, %v853
    %v855 = vpop.f32.mrf.mxu0
    %856 = vdwg.mxu0
    %v857 = vadd.f32 %v780, %v854
    %v858 = vxor.u32 %v857, 2147483648
    %v859 = vmul.f32 %v858, 1.442695
    %v860 = vpow.pop %v859
    %v861 = vadd.f32 %v860, 1.0
    %v862 = vrcp.pop %v861
    %v863 = vmul.f32 1.0, %v862
    %v864 = vtanh.pop %v857
    %v865 = vmul.f32 %v863, %v768
    %867 = vrot.lane.b32.xlu0 %v864, 64
    %v868 = vpop.permute.xlu0 %867
    %v870 = vmul.f32 %v863, %v868
    %872 = vrot.lane.b32.xlu0 %v870, 32
    %v873 = vpop.permute.xlu0 %872
    %v875 = vadd.f32 %v865, %v873
    %v876 = vtanh.pop %v875
    %878 = vrot.lane.b32.xlu0 %v876, 64
    %v879 = vpop.permute.xlu0 %878
    %v881 = vmul.f32 %v863, %v879
    %883 = vrot.lane.b32.xlu0 %v881, 32
    %v884 = vpop.permute.xlu0 %883
    %886 = vst.msk [vmem:[#allocation3 + $0xc] sm:$0x3] %vm243, %v884
    %v887 = vld [vmem:[#allocation2 + $0xe] sm:$0x3]
    %v888 = vld [vmem:[%s4] sm:$0xff]
    %v889 = vld [vmem:[%s4 + $0x8] sm:$0xff]
    %v890 = vld [vmem:[%s4 + $0x10] sm:$0xff]
    %v891 = vld [vmem:[%s4 + $0x18] sm:$0xff]
    %v892 = vsel %vm136, %v884, 0
    %894 = vmatprep.subr.mxu0 0.0
    %895 = vmatpush1.msra.mxu0 0.0
    %896 = vmatprep.subr.mxu0 0.0
    %897 = vmatpush1.msra.mxu0 0.0
    %898 = vmatprep.subr.mxu0 0.0
    %899 = vmatpush1.msra.mxu0 0.0
    %900 = vmatprep.subr.mxu0 0.0
    %901 = vmatpush1.msra.mxu0 0.0
    %902 = vmatprep.subr.mxu0 0.0
    %903 = vmatpush1.msra.mxu0 0.0
    %904 = vmatprep.subr.mxu0 0.0
    %905 = vmatpush1.msra.mxu0 0.0
    %906 = vmatprep.subr.mxu0 0.0
    %907 = vmatpush1.msra.mxu0 0.0
    %908 = vmatprep.subr.mxu0 0.0
    %909 = vmatpush1.msra.mxu0 0.0
    %910 = vmatprep.subr.mxu0 0.0
    %911 = vmatpush1.msra.mxu0 0.0
    %912 = vmatprep.subr.mxu0 0.0
    %913 = vmatpush1.msra.mxu0 0.0
    %914 = vmatprep.subr.mxu0 0.0
    %915 = vmatpush1.msra.mxu0 0.0
    %916 = vmatprep.subr.mxu0 0.0
    %917 = vmatpush1.msra.mxu0 0.0
    %918 = vmatprep.subr.mxu0 0.0
    %919 = vmatpush1.msra.mxu0 %v891
    %920 = vmatprep.subr.mxu0 0.0
    %921 = vmatpush1.msra.mxu0 %v890
    %922 = vmatprep.subr.mxu0 0.0
    %923 = vmatpush1.msra.mxu0 %v889
    %924 = vmatprep.subr.mxu0 0.0
    %925 = vmatpush1.msra.mxu0 %v888
    %926 = vmatprep.subr.mxu0 0.0
    %927 = vmatpush2.msra.mxu0 0.0
    %928 = vmatprep.subr.mxu0 0.0
    %929 = vmatpush2.msra.mxu0 0.0
    %930 = vmatprep.subr.mxu0 0.0
    %931 = vmatpush2.msra.mxu0 0.0
    %932 = vmatprep.subr.mxu0 0.0
    %933 = vmatpush2.msra.mxu0 0.0
    %934 = vmatprep.subr.mxu0 0.0
    %935 = vmatpush2.msra.mxu0 0.0
    %936 = vmatprep.subr.mxu0 0.0
    %937 = vmatpush2.msra.mxu0 0.0
    %938 = vmatprep.subr.mxu0 0.0
    %939 = vmatpush2.msra.mxu0 0.0
    %940 = vmatprep.subr.mxu0 0.0
    %941 = vmatpush2.msra.mxu0 0.0
    %942 = vmatprep.subr.mxu0 0.0
    %943 = vmatpush2.msra.mxu0 0.0
    %944 = vmatprep.subr.mxu0 0.0
    %945 = vmatpush2.msra.mxu0 0.0
    %946 = vmatprep.subr.mxu0 0.0
    %947 = vmatpush2.msra.mxu0 0.0
    %948 = vmatprep.subr.mxu0 0.0
    %949 = vmatpush2.msra.mxu0 0.0
    %950 = vmatprep.subr.mxu0 0.0
    %951 = vmatpush2.msra.mxu0 0.0
    %952 = vmatprep.subr.mxu0 0.0
    %953 = vmatpush2.msra.mxu0 0.0
    %954 = vmatprep.subr.mxu0 0.0
    %955 = vmatpush2.msra.mxu0 0.0
    %956 = vmatprep.subr.mxu0 0.0
    %957 = vmatpush2.msra.mxu0 0.0
    %958 = vmatprep.mubr.f32.mxu0 0.0
    %959 = vmatmul.mubr.f32.gmra.mxu0 %v892
    %v960 = vpop.f32.mrf.mxu0
    %v961 = vadd.f32 0.0, %v960
    %v962 = vpop.f32.mrf.mxu0
    %963 = vdwg.mxu0
    %v964 = vadd.f32 %v887, %v961
    %v965 = vxor.u32 %v964, 2147483648
    %v966 = vmul.f32 %v965, 1.442695
    %v967 = vpow.pop %v966
    %v968 = vadd.f32 %v967, 1.0
    %v969 = vrcp.pop %v968
    %v970 = vmul.f32 1.0, %v969
    %v971 = vtanh.pop %v964
    %v972 = vmul.f32 %v970, %v875
    %974 = vrot.lane.b32.xlu0 %v971, 64
    %v975 = vpop.permute.xlu0 %974
    %v977 = vmul.f32 %v970, %v975
    %979 = vrot.lane.b32.xlu0 %v977, 32
    %v980 = vpop.permute.xlu0 %979
    %v982 = vadd.f32 %v972, %v980
    %v983 = vtanh.pop %v982
    %985 = vrot.lane.b32.xlu0 %v983, 64
    %v986 = vpop.permute.xlu0 %985
    %v988 = vmul.f32 %v970, %v986
    %990 = vrot.lane.b32.xlu0 %v988, 32
    %v991 = vpop.permute.xlu0 %990
    %993 = vst.msk [vmem:[#allocation3 + $0xe] sm:$0x3] %vm243, %v991
    %v994 = vld [vmem:[#allocation3] sm:$0xff]
    %v995 = vld [vmem:[#allocation3 + $0x8] sm:$0xff]
    %v996 = vld [vmem:[%s6] sm:$0xff]
    %v997 = vld [vmem:[%s6 + $0x8] sm:$0xff]
    %v998 = vld [vmem:[%s6 + $0x10] sm:$0xff]
    %v999 = vld [vmem:[%s6 + $0x18] sm:$0xff]
    %v1000 = vld [vmem:[%s7] sm:$0x1]
    %v1002 = vlaneseq
    %v1003 = vshrl.u32 %v1002, 7
    %v1004 = vsub.s32 0, %v1003
    %v1005 = vrot.slane %v1000, %v1004
    %v1008 = vsel %vm136, %v994, 0
    %v1011 = vsel %vm136, %v995, 0
    %1013 = vmatprep.subr.mxu0 0.0
    %1014 = vmatpush1.msra.mxu0 0.0
    %1015 = vmatprep.subr.mxu0 0.0
    %1016 = vmatpush1.msra.mxu0 0.0
    %1017 = vmatprep.subr.mxu0 0.0
    %1018 = vmatpush1.msra.mxu0 0.0
    %1019 = vmatprep.subr.mxu0 0.0
    %1020 = vmatpush1.msra.mxu0 0.0
    %1021 = vmatprep.subr.mxu0 0.0
    %1022 = vmatpush1.msra.mxu0 0.0
    %1023 = vmatprep.subr.mxu0 0.0
    %1024 = vmatpush1.msra.mxu0 0.0
    %1025 = vmatprep.subr.mxu0 0.0
    %1026 = vmatpush1.msra.mxu0 0.0
    %1027 = vmatprep.subr.mxu0 0.0
    %1028 = vmatpush1.msra.mxu0 0.0
    %1029 = vmatprep.subr.mxu0 0.0
    %1030 = vmatpush1.msra.mxu0 0.0
    %1031 = vmatprep.subr.mxu0 0.0
    %1032 = vmatpush1.msra.mxu0 0.0
    %1033 = vmatprep.subr.mxu0 0.0
    %1034 = vmatpush1.msra.mxu0 0.0
    %1035 = vmatprep.subr.mxu0 0.0
    %1036 = vmatpush1.msra.mxu0 0.0
    %1037 = vmatprep.subr.mxu0 0.0
    %1038 = vmatpush1.msra.mxu0 %v999
    %1039 = vmatprep.subr.mxu0 0.0
    %1040 = vmatpush1.msra.mxu0 %v998
    %1041 = vmatprep.subr.mxu0 0.0
    %1042 = vmatpush1.msra.mxu0 %v997
    %1043 = vmatprep.subr.mxu0 0.0
    %1044 = vmatpush1.msra.mxu0 %v996
    %1045 = vmatprep.subr.mxu0 0.0
    %1046 = vmatpush2.msra.mxu0 0.0
    %1047 = vmatprep.subr.mxu0 0.0
    %1048 = vmatpush2.msra.mxu0 0.0
    %1049 = vmatprep.subr.mxu0 0.0
    %1050 = vmatpush2.msra.mxu0 0.0
    %1051 = vmatprep.subr.mxu0 0.0
    %1052 = vmatpush2.msra.mxu0 0.0
    %1053 = vmatprep.subr.mxu0 0.0
    %1054 = vmatpush2.msra.mxu0 0.0
    %1055 = vmatprep.subr.mxu0 0.0
    %1056 = vmatpush2.msra.mxu0 0.0
    %1057 = vmatprep.subr.mxu0 0.0
    %1058 = vmatpush2.msra.mxu0 0.0
    %1059 = vmatprep.subr.mxu0 0.0
    %1060 = vmatpush2.msra.mxu0 0.0
    %1061 = vmatprep.subr.mxu0 0.0
    %1062 = vmatpush2.msra.mxu0 0.0
    %1063 = vmatprep.subr.mxu0 0.0
    %1064 = vmatpush2.msra.mxu0 0.0
    %1065 = vmatprep.subr.mxu0 0.0
    %1066 = vmatpush2.msra.mxu0 0.0
    %1067 = vmatprep.subr.mxu0 0.0
    %1068 = vmatpush2.msra.mxu0 0.0
    %1069 = vmatprep.subr.mxu0 0.0
    %1070 = vmatpush2.msra.mxu0 0.0
    %1071 = vmatprep.subr.mxu0 0.0
    %1072 = vmatpush2.msra.mxu0 0.0
    %1073 = vmatprep.subr.mxu0 0.0
    %1074 = vmatpush2.msra.mxu0 0.0
    %1075 = vmatprep.subr.mxu0 0.0
    %1076 = vmatpush2.msra.mxu0 0.0
    %1077 = vmatprep.mubr.f32.mxu0 0.0
    %1078 = vmatmul.mubr.f32.gmra.mxu0 %v1008
    %v1079 = vpop.f32.mrf.mxu0
    %v1080 = vadd.f32 %v1005, %v1079
    %v1081 = vpop.f32.mrf.mxu0
    %1082 = vmatprep.mubr.f32.mxu0 0.0
    %1083 = vmatmul.mubr.f32.gmra.mxu0 %v1011
    %v1084 = vpop.f32.mrf.mxu0
    %v1085 = vadd.f32 %v1005, %v1084
    %v1086 = vpop.f32.mrf.mxu0
    %1087 = vdwg.mxu0
    %1088 = vst.msk [vmem:[%s8] sm:$0xff] %vm45, %v1080
    %1089 = vst.msk [vmem:[%s8 + $0x8] sm:$0xff] %vm45, %v1085
    %1090 = vst.msk [vmem:[#allocation4] sm:$0x3] %vm243, %v991
    %1092 = vrot.lane.b32.xlu0 %v982, 96
    %v1093 = vpop.permute.xlu0 %1092
    %1095 = vst.msk [vmem:[#allocation6] sm:$0x3] %vm243, %v1093
    // Predicated region
    $region34: #{rnn_decoder_forward.1} parent=1 // pred_check
      _
    $region35: #{rnn_decoder_forward.1} parent=1 // pred_check_branch
      %1097 = sbr.rel (0) target = $region37
    $region36: #{rnn_decoder_forward.1} parent=1 // pred_region
      _
    $region37: #{rnn_decoder_forward.1} parent=1 // pred_fallthru
      _
    // Predicated region
    $region38: #{rnn_decoder_forward.1} parent=1 // pred_check
      _
    $region39: #{rnn_decoder_forward.1} parent=1 // pred_check_branch
      %1099 = sbr.rel (0) target = $region41
    $region40: #{rnn_decoder_forward.1} parent=1 // pred_region
      %s1101 = ssub.s32 32, 32
      %1102 = vsyncadd [#allocation5], %s1101
      %s1104 = sshll.u32 [#allocation4], 4
      %s1105 = int_to_ptr.vmem [resolvable:$true] %s1104
      %1107 = dma.vmem_to_hbm [thread:$0]  %s1105, 32, %s9, [#allocation5]
    $region41: #{rnn_decoder_forward.1} parent=1 // pred_fallthru
      _
    // Predicated region
    $region42: #{rnn_decoder_forward.1} parent=1 // pred_check
      _
    $region43: #{rnn_decoder_forward.1} parent=1 // pred_check_branch
      %1109 = sbr.rel (0) target = $region45
    $region44: #{rnn_decoder_forward.1} parent=1 // pred_region
      %s1111 = ssub.s32 32, 32
      %1112 = vsyncadd [#allocation7], %s1111
      %s1114 = sshll.u32 [#allocation6], 4
      %s1115 = int_to_ptr.vmem [resolvable:$true] %s1114
      %1117 = dma.vmem_to_hbm [thread:$0]  %s1115, 32, %s10, [#allocation7]
    $region45: #{rnn_decoder_forward.1} parent=1 // pred_fallthru
      _
    // Predicated region
    $region46: #{rnn_decoder_forward.1} parent=1 // pred_check
      _
    $region47: #{rnn_decoder_forward.1} parent=1 // pred_check_branch
      %1119 = sbr.rel (0) target = $region49
    $region48: #{rnn_decoder_forward.1} parent=1 // pred_region
      _
    $region49: #{rnn_decoder_forward.1} parent=1 // pred_fallthru
      _
    // Predicated region
    $region50: #{rnn_decoder_forward.1} parent=1 // pred_check
      _
    $region51: #{rnn_decoder_forward.1} parent=1 // pred_check_branch
      %1121 = sbr.rel (0) target = $region53
    $region52: #{rnn_decoder_forward.1} parent=1 // pred_region
      %1122 = dma.done [#allocation5], 32
    $region53: #{rnn_decoder_forward.1} parent=1 // pred_fallthru
      _
    // Predicated region
    $region54: #{rnn_decoder_forward.1} parent=1 // pred_check
      _
    $region55: #{rnn_decoder_forward.1} parent=1 // pred_check_branch
      %1124 = sbr.rel (0) target = $region57
    $region56: #{rnn_decoder_forward.1} parent=1 // pred_region
      %1125 = dma.done [#allocation7], 32
    $region57: #{rnn_decoder_forward.1} parent=1 // pred_fallthru
      _
    %1126 = vsyncpa [#allocation5], 1
    %1127 = vsyncpa [#allocation7], 1

</llo_original>
